<compile_context>
chip_gen: v7x
topology: tpu7x:2x2x1
jax: 0.10.0
libtpu: 0.0.40
codegen_flags: <defaults>
</compile_context>

<pallas_src>
import math

import jax
import jax.numpy as jnp
from jax.experimental import pallas as pl
from jax.experimental.pallas import tpu as pltpu


# ----------------------------------------------------------------------------
# Fused kernel: two tiny MLPs + elementwise affine on one batch tile.
# ----------------------------------------------------------------------------
def _fused_kernel(d_ref, w0_ref, b0_ref, w1_ref, b1_ref, w2_ref, b2_ref,
                  w3_ref, b3_ref, x_ref, o_ref):
    # d_ref  : SMEM (in_dim,) f32 scalars (the light direction)
    # w*_ref : stacked params, leading dim 2 (0 = mul-MLP, 1 = add-MLP)
    # x_ref  : (tb, out_dim) batch tile;  o_ref: same shape/dtype as x tile
    in_dim = w0_ref.shape[1]
    hidden = w0_ref.shape[2]

    def mlp(j):
        # Layer 0: K = in_dim (tiny) -> VPU scalar-broadcast outer product.
        w0 = w0_ref[j]                       # (in_dim, hidden)
        acc = b0_ref[j]                      # (1, hidden)
        for k in range(in_dim):              # in_dim is static & tiny (usually 1)
            acc = acc + d_ref[k] * w0[k:k + 1, :]
        h = jnp.maximum(acc, 0.0)
        # Sublane-pad to 8 rows for tile-friendly MXU matmuls (rows identical).
        h = jnp.broadcast_to(h, (8, hidden))
        h = jnp.maximum(
            jnp.dot(h, w1_ref[j], preferred_element_type=jnp.float32)
            + b1_ref[j], 0.0)
        h = jnp.maximum(
            jnp.dot(h, w2_ref[j], preferred_element_type=jnp.float32)
            + b2_ref[j], 0.0)
        out = (jnp.dot(h, w3_ref[j], preferred_element_type=jnp.float32)
               + b3_ref[j])
        return out[0:1, :]                   # (1, out_dim)

    light_m = mlp(0)
    light_a = mlp(1)

    x = x_ref[...].astype(jnp.float32)
    o_ref[...] = (x * light_m + light_a).astype(o_ref.dtype)


def _resident_spec(arr):
    """Full-shape block with a constant index map -> DMA'd once, stays in VMEM."""
    idx = (0,) * arr.ndim
    return pl.BlockSpec(arr.shape, lambda i, _idx=idx: _idx)


def fused_light_embed(x, direction, params):
    """x: (B, out_dim); direction: (in_dim,) f32; params: stacked MLP params."""
    B, D = x.shape
    w0, b0, w1, b1, w2, b2, w3, b3 = params
    weight_bytes = sum(int(p.size) * p.dtype.itemsize for p in params)
    itemsize = x.dtype.itemsize
    row_bytes = D * itemsize

    # Batch tile: target ~8 MiB input tiles (amortizes the ~0.35 us per-step
    # overhead, hits the HBM roofline, and hides the per-tile MLP recompute
    # under the next tile's DMA), capped so double-buffered in+out tiles plus
    # the (double-buffered) resident weights fit VMEM on v5e/v6e/v7x.
    data_budget = max((32 << 20) - 2 * weight_bytes, 4 << 20)
    cap_rows = max(8, data_budget // (4 * row_bytes))   # 2 arrays x 2 buffers
    tgt_rows = max(8, (8 << 20) // row_bytes)           # ~8 MiB per tile
    tb = int(min(B, tgt_rows, cap_rows))
    if tb < B:
        tb = max(8, (tb // 8) * 8)       # sublane-aligned when not the full dim

    nb = -(-B // tb)
    Bp = nb * tb
    x_in = x if Bp == B else jnp.pad(x, ((0, Bp - B), (0, 0)))

    est = 2 * weight_bytes + 4 * tb * row_bytes + (8 << 20)
    vmem_limit = int(min(max(est, 16 << 20), 48 << 20))  # stay under v7x's 64 MiB/TC

    out = pl.pallas_call(
        _fused_kernel,
        out_shape=jax.ShapeDtypeStruct((Bp, D), x.dtype),
        grid=(nb,),
        in_specs=[
            pl.BlockSpec(memory_space=pltpu.MemorySpace.SMEM),   # direction scalars
            _resident_spec(w0), _resident_spec(b0),
            _resident_spec(w1), _resident_spec(b1),
            _resident_spec(w2), _resident_spec(b2),
            _resident_spec(w3), _resident_spec(b3),
            pl.BlockSpec((tb, D), lambda i: (i, 0)),             # x tile
        ],
        out_specs=pl.BlockSpec((tb, D), lambda i: (i, 0)),
        compiler_params=pltpu.CompilerParams(
            dimension_semantics=("parallel",),
            vmem_limit_bytes=vmem_limit,
        ),
    )(direction.astype(jnp.float32), w0, b0, w1, b1, w2, b2, w3, b3, x_in)

    return out[:B] if Bp != B else out


# ----------------------------------------------------------------------------
# Parameter construction (mirrors get_mlp + initialize_weights_of_last_output).
# Per-layer params are stacked over the two MLPs: index 0 = light_mul (last
# bias = 1), index 1 = light_add (last bias = 0). Weights stored (fan_in,
# fan_out) so the kernel computes h @ W.
# ----------------------------------------------------------------------------
def make_stacked_mlp_params(key, in_dim, hidden_dim, out_dim):
    def lin(k, fan_in, fan_out):
        bound = 1.0 / math.sqrt(fan_in)
        kw, kb = jax.random.split(k)
        w = jax.random.uniform(kw, (fan_in, fan_out), jnp.float32, -bound, bound)
        b = jax.random.uniform(kb, (1, fan_out), jnp.float32, -bound, bound)
        return w, b

    def one_mlp(k, target):
        ks = jax.random.split(k, 3)
        w0, b0 = lin(ks[0], in_dim, hidden_dim)
        w1, b1 = lin(ks[1], hidden_dim, hidden_dim)
        w2, b2 = lin(ks[2], hidden_dim, hidden_dim)
        w3 = jnp.zeros((hidden_dim, out_dim), jnp.float32)       # W = 0
        b3 = jnp.full((1, out_dim), float(target), jnp.float32)  # b = target
        return w0, b0, w1, b1, w2, b2, w3, b3

    k_mul, k_add = jax.random.split(key)
    pm = one_mlp(k_mul, 1.0)
    pa = one_mlp(k_add, 0.0)
    return tuple(jnp.stack([m, a], axis=0) for m, a in zip(pm, pa))


class LightEmbedBlockPallas:
    """JAX/Pallas port of LightEmbedBlock (hidden_layers=2 structure)."""

    def __init__(self, out_dim, in_dim=1, hidden_dim=256, key=None):
        if key is None:
            key = jax.random.PRNGKey(0)
        self.in_dim = in_dim
        self.out_dim = out_dim
        self.hidden_dim = hidden_dim
        self.params = make_stacked_mlp_params(key, in_dim, hidden_dim, out_dim)
        self.light_direction = jnp.zeros((in_dim,), jnp.float32)
        self.is_apply_cfg = False

    def enable_apply_cfg(self):
        self.is_apply_cfg = True

    def disable_apply_cfg(self):
        self.is_apply_cfg = False

    def set_apply_cfg(self, is_apply_cfg):
        self.is_apply_cfg = is_apply_cfg

    def set_light_direction(self, direction):
        assert direction is None or direction.shape[-1] == self.in_dim
        self.light_direction = direction

    def __call__(self, x):
        use_cfg = self.is_apply_cfg and (x.shape[0] % 2 == 0)
        if use_cfg:
            half = x.shape[0] // 2
            x_uncond, v = x[:half], x[half:]
        else:
            x_uncond, v = None, x

        direction = self.light_direction
        if direction is not None:
            # PyTorch casts direction to v.dtype; MLPs + affine run in f32 in
            # the kernel and the result is cast back to x.dtype.
            d = direction.astype(v.dtype).astype(jnp.float32)
            y = fused_light_embed(v, d, self.params)
        else:
            y = v

        if use_cfg:
            y = jnp.concatenate([x_uncond, y], axis=0)
        return y


# ----------------------------------------------------------------------------
# Pure-JAX reference for correctness checking.
# ----------------------------------------------------------------------------
def ref_mlp(d, params, j):
    w0, b0, w1, b1, w2, b2, w3, b3 = params
    h = b0[j, 0]
    for k in range(d.shape[0]):
        h = h + d[k] * w0[j, k]
    h = jnp.maximum(h, 0.0)
    h = jnp.maximum(h @ w1[j] + b1[j, 0], 0.0)
    h = jnp.maximum(h @ w2[j] + b2[j, 0], 0.0)
    return h @ w3[j] + b3[j, 0]


def ref_forward(block, x):
    d = block.light_direction.astype(x.dtype).astype(jnp.float32)
    m = ref_mlp(d, block.params, 0)
    a = ref_mlp(d, block.params, 1)
    return (x.astype(jnp.float32) * m[None, :] + a[None, :]).astype(x.dtype)


if __name__ == "__main__":
    key = jax.random.PRNGKey(0)
    B, out_dim, in_dim, hidden_dim = 8, 256, 1, 256

    k_x, k_d, k_p, k_w, k_b = jax.random.split(key, 5)
    x = jax.random.normal(k_x, (B, out_dim), jnp.float32)
    direction = jax.random.normal(k_d, (in_dim,), jnp.float32)

    block = LightEmbedBlockPallas(out_dim, in_dim=in_dim,
                                  hidden_dim=hidden_dim, key=k_p)
    block.set_light_direction(direction)

    # 1) Default init => last layers are (W=0, b=target) => light_m == 1,
    #    light_a == 0, so the block must be an (exact) identity.
    y0 = jax.block_until_ready(block(x))
    assert y0.shape == x.shape and y0.dtype == x.dtype
    assert jnp.allclose(y0, x, atol=1e-6, rtol=0.0), "default-init identity failed"

    # 2) Perturb the last layers so the full MLP chain + affine is exercised.
    w0, b0, w1, b1, w2, b2, w3, b3 = block.params
    w3 = jax.random.uniform(k_w, w3.shape, jnp.float32, -0.05, 0.05)
    b3 = b3 + jax.random.uniform(k_b, b3.shape, jnp.float32, -0.5, 0.5)
    block.params = (w0, b0, w1, b1, w2, b2, w3, b3)

    y = jax.block_until_ready(block(x))
    y_ref = ref_forward(block, x)
    assert jnp.allclose(y, y_ref, atol=2e-2, rtol=2e-2), "mismatch vs reference"

    # 3) CFG path: first half untouched, second half gets the affine.
    block.set_apply_cfg(True)
    y_cfg = jax.block_until_ready(block(x))
    half = B // 2
    assert jnp.array_equal(y_cfg[:half], x[:half]), "CFG uncond half modified"
    assert jnp.allclose(y_cfg[half:], ref_forward(block, x[half:]),
                        atol=2e-2, rtol=2e-2), "CFG cond half mismatch"

    print("KERNEL_OK")
</pallas_src>

<mosaic_0001>
module attributes {stable_mosaic.version = 11 : i64} {
  func.func @_fused_kernel(%arg0: i32, %arg1: memref<1xf32, #tpu.memory_space<smem>>, %arg2: memref<2x1x256xf32, #tpu.memory_space<vmem>>, %arg3: memref<2x1x256xf32, #tpu.memory_space<vmem>>, %arg4: memref<2x256x256xf32, #tpu.memory_space<vmem>>, %arg5: memref<2x1x256xf32, #tpu.memory_space<vmem>>, %arg6: memref<2x256x256xf32, #tpu.memory_space<vmem>>, %arg7: memref<2x1x256xf32, #tpu.memory_space<vmem>>, %arg8: memref<2x256x256xf32, #tpu.memory_space<vmem>>, %arg9: memref<2x1x256xf32, #tpu.memory_space<vmem>>, %arg10: memref<8x256xf32, #tpu.memory_space<vmem>>, %arg11: memref<8x256xf32, #tpu.memory_space<vmem>>) attributes {dimension_semantics = [#tpu.dimension_semantics<parallel>], iteration_bounds = array<i64: 1>, scalar_prefetch = 0 : i64, scratch_operands = 0 : i64, tpu.core_type = #tpu.core_type<tc>, window_params = [{transform_indices = @transform_0, window_bounds = array<i64: 1>}, {pipeline_mode = #tpu.pipeline_mode<synchronous>, transform_indices = @transform_1, window_bounds = array<i64: 2, 1, 256>}, {pipeline_mode = #tpu.pipeline_mode<synchronous>, transform_indices = @transform_2, window_bounds = array<i64: 2, 1, 256>}, {pipeline_mode = #tpu.pipeline_mode<synchronous>, transform_indices = @transform_3, window_bounds = array<i64: 2, 256, 256>}, {pipeline_mode = #tpu.pipeline_mode<synchronous>, transform_indices = @transform_4, window_bounds = array<i64: 2, 1, 256>}, {pipeline_mode = #tpu.pipeline_mode<synchronous>, transform_indices = @transform_5, window_bounds = array<i64: 2, 256, 256>}, {pipeline_mode = #tpu.pipeline_mode<synchronous>, transform_indices = @transform_6, window_bounds = array<i64: 2, 1, 256>}, {pipeline_mode = #tpu.pipeline_mode<synchronous>, transform_indices = @transform_7, window_bounds = array<i64: 2, 256, 256>}, {pipeline_mode = #tpu.pipeline_mode<synchronous>, transform_indices = @transform_8, window_bounds = array<i64: 2, 1, 256>}, {transform_indices = @transform_9, window_bounds = array<i64: 8, 256>}, {transform_indices = @transform_10, window_bounds = array<i64: 8, 256>}]} {
    %c0 = arith.constant 0 : index
    %c0_0 = arith.constant 0 : index
    %c0_1 = arith.constant 0 : index
    %0 = vector.load %arg2[%c0, %c0_0, %c0_1] : memref<2x1x256xf32, #tpu.memory_space<vmem>>, vector<1x1x256xf32>
    %1 = vector.shape_cast %0 : vector<1x1x256xf32> to vector<1x256xf32>
    %c0_2 = arith.constant 0 : index
    %c0_3 = arith.constant 0 : index
    %c0_4 = arith.constant 0 : index
    %2 = vector.load %arg3[%c0_2, %c0_3, %c0_4] : memref<2x1x256xf32, #tpu.memory_space<vmem>>, vector<1x1x256xf32>
    %3 = vector.shape_cast %2 : vector<1x1x256xf32> to vector<1x256xf32>
    %c0_5 = arith.constant 0 : index
    %4 = memref.load %arg1[%c0_5] : memref<1xf32, #tpu.memory_space<smem>>
    %5 = vector.broadcast %4 : f32 to vector<1x256xf32>
    %6 = arith.mulf %5, %1 : vector<1x256xf32>
    %7 = arith.addf %3, %6 : vector<1x256xf32>
    %cst = arith.constant 0.000000e+00 : f32
    %8 = vector.broadcast %cst : f32 to vector<1x256xf32>
    %9 = arith.maximumf %7, %8 : vector<1x256xf32>
    %10 = vector.shape_cast %9 : vector<1x256xf32> to vector<1x256xf32>
    %11 = vector.broadcast %10 : vector<1x256xf32> to vector<8x256xf32>
    %c0_6 = arith.constant 0 : index
    %c0_7 = arith.constant 0 : index
    %c0_8 = arith.constant 0 : index
    %12 = vector.load %arg4[%c0_6, %c0_7, %c0_8] : memref<2x256x256xf32, #tpu.memory_space<vmem>>, vector<1x256x256xf32>
    %13 = vector.shape_cast %12 : vector<1x256x256xf32> to vector<256x256xf32>
    %cst_9 = arith.constant dense<0.000000e+00> : vector<8x256xf32>
    %14 = tpu.matmul %11, %13, %cst_9 {dimension_numbers = #tpu.dot_dimension_numbers<[1], [0], [0], [1], [0, 0, 1, 1], [], []>} : vector<8x256xf32>, vector<256x256xf32>, vector<8x256xf32> -> vector<8x256xf32>
    %c0_10 = arith.constant 0 : index
    %c0_11 = arith.constant 0 : index
    %c0_12 = arith.constant 0 : index
    %15 = vector.load %arg5[%c0_10, %c0_11, %c0_12] : memref<2x1x256xf32, #tpu.memory_space<vmem>>, vector<1x1x256xf32>
    %16 = vector.shape_cast %15 : vector<1x1x256xf32> to vector<1x256xf32>
    %17 = vector.broadcast %16 : vector<1x256xf32> to vector<8x256xf32>
    %18 = arith.addf %14, %17 : vector<8x256xf32>
    %cst_13 = arith.constant 0.000000e+00 : f32
    %19 = vector.broadcast %cst_13 : f32 to vector<8x256xf32>
    %20 = arith.maximumf %18, %19 : vector<8x256xf32>
    %c0_14 = arith.constant 0 : index
    %c0_15 = arith.constant 0 : index
    %c0_16 = arith.constant 0 : index
    %21 = vector.load %arg6[%c0_14, %c0_15, %c0_16] : memref<2x256x256xf32, #tpu.memory_space<vmem>>, vector<1x256x256xf32>
    %22 = vector.shape_cast %21 : vector<1x256x256xf32> to vector<256x256xf32>
    %cst_17 = arith.constant dense<0.000000e+00> : vector<8x256xf32>
    %23 = tpu.matmul %20, %22, %cst_17 {dimension_numbers = #tpu.dot_dimension_numbers<[1], [0], [0], [1], [0, 0, 1, 1], [], []>} : vector<8x256xf32>, vector<256x256xf32>, vector<8x256xf32> -> vector<8x256xf32>
    %c0_18 = arith.constant 0 : index
    %c0_19 = arith.constant 0 : index
    %c0_20 = arith.constant 0 : index
    %24 = vector.load %arg7[%c0_18, %c0_19, %c0_20] : memref<2x1x256xf32, #tpu.memory_space<vmem>>, vector<1x1x256xf32>
    %25 = vector.shape_cast %24 : vector<1x1x256xf32> to vector<1x256xf32>
    %26 = vector.broadcast %25 : vector<1x256xf32> to vector<8x256xf32>
    %27 = arith.addf %23, %26 : vector<8x256xf32>
    %cst_21 = arith.constant 0.000000e+00 : f32
    %28 = vector.broadcast %cst_21 : f32 to vector<8x256xf32>
    %29 = arith.maximumf %27, %28 : vector<8x256xf32>
    %c0_22 = arith.constant 0 : index
    %c0_23 = arith.constant 0 : index
    %c0_24 = arith.constant 0 : index
    %30 = vector.load %arg8[%c0_22, %c0_23, %c0_24] : memref<2x256x256xf32, #tpu.memory_space<vmem>>, vector<1x256x256xf32>
    %31 = vector.shape_cast %30 : vector<1x256x256xf32> to vector<256x256xf32>
    %cst_25 = arith.constant dense<0.000000e+00> : vector<8x256xf32>
    %32 = tpu.matmul %29, %31, %cst_25 {dimension_numbers = #tpu.dot_dimension_numbers<[1], [0], [0], [1], [0, 0, 1, 1], [], []>} : vector<8x256xf32>, vector<256x256xf32>, vector<8x256xf32> -> vector<8x256xf32>
    %c0_26 = arith.constant 0 : index
    %c0_27 = arith.constant 0 : index
    %c0_28 = arith.constant 0 : index
    %33 = vector.load %arg9[%c0_26, %c0_27, %c0_28] : memref<2x1x256xf32, #tpu.memory_space<vmem>>, vector<1x1x256xf32>
    %34 = vector.shape_cast %33 : vector<1x1x256xf32> to vector<1x256xf32>
    %35 = vector.broadcast %34 : vector<1x256xf32> to vector<8x256xf32>
    %36 = arith.addf %32, %35 : vector<8x256xf32>
    %37 = vector.extract_strided_slice %36 {offsets = [0, 0], sizes = [1, 256], strides = [1, 1]} : vector<8x256xf32> to vector<1x256xf32>
    %c1 = arith.constant 1 : index
    %c0_29 = arith.constant 0 : index
    %c0_30 = arith.constant 0 : index
    %38 = vector.load %arg2[%c1, %c0_29, %c0_30] : memref<2x1x256xf32, #tpu.memory_space<vmem>>, vector<1x1x256xf32>
    %39 = vector.shape_cast %38 : vector<1x1x256xf32> to vector<1x256xf32>
    %c1_31 = arith.constant 1 : index
    %c0_32 = arith.constant 0 : index
    %c0_33 = arith.constant 0 : index
    %40 = vector.load %arg3[%c1_31, %c0_32, %c0_33] : memref<2x1x256xf32, #tpu.memory_space<vmem>>, vector<1x1x256xf32>
    %41 = vector.shape_cast %40 : vector<1x1x256xf32> to vector<1x256xf32>
    %c0_34 = arith.constant 0 : index
    %42 = memref.load %arg1[%c0_34] : memref<1xf32, #tpu.memory_space<smem>>
    %43 = vector.broadcast %42 : f32 to vector<1x256xf32>
    %44 = arith.mulf %43, %39 : vector<1x256xf32>
    %45 = arith.addf %41, %44 : vector<1x256xf32>
    %cst_35 = arith.constant 0.000000e+00 : f32
    %46 = vector.broadcast %cst_35 : f32 to vector<1x256xf32>
    %47 = arith.maximumf %45, %46 : vector<1x256xf32>
    %48 = vector.shape_cast %47 : vector<1x256xf32> to vector<1x256xf32>
    %49 = vector.broadcast %48 : vector<1x256xf32> to vector<8x256xf32>
    %c1_36 = arith.constant 1 : index
    %c0_37 = arith.constant 0 : index
    %c0_38 = arith.constant 0 : index
    %50 = vector.load %arg4[%c1_36, %c0_37, %c0_38] : memref<2x256x256xf32, #tpu.memory_space<vmem>>, vector<1x256x256xf32>
    %51 = vector.shape_cast %50 : vector<1x256x256xf32> to vector<256x256xf32>
    %cst_39 = arith.constant dense<0.000000e+00> : vector<8x256xf32>
    %52 = tpu.matmul %49, %51, %cst_39 {dimension_numbers = #tpu.dot_dimension_numbers<[1], [0], [0], [1], [0, 0, 1, 1], [], []>} : vector<8x256xf32>, vector<256x256xf32>, vector<8x256xf32> -> vector<8x256xf32>
    %c1_40 = arith.constant 1 : index
    %c0_41 = arith.constant 0 : index
    %c0_42 = arith.constant 0 : index
    %53 = vector.load %arg5[%c1_40, %c0_41, %c0_42] : memref<2x1x256xf32, #tpu.memory_space<vmem>>, vector<1x1x256xf32>
    %54 = vector.shape_cast %53 : vector<1x1x256xf32> to vector<1x256xf32>
    %55 = vector.broadcast %54 : vector<1x256xf32> to vector<8x256xf32>
    %56 = arith.addf %52, %55 : vector<8x256xf32>
    %cst_43 = arith.constant 0.000000e+00 : f32
    %57 = vector.broadcast %cst_43 : f32 to vector<8x256xf32>
    %58 = arith.maximumf %56, %57 : vector<8x256xf32>
    %c1_44 = arith.constant 1 : index
    %c0_45 = arith.constant 0 : index
    %c0_46 = arith.constant 0 : index
    %59 = vector.load %arg6[%c1_44, %c0_45, %c0_46] : memref<2x256x256xf32, #tpu.memory_space<vmem>>, vector<1x256x256xf32>
    %60 = vector.shape_cast %59 : vector<1x256x256xf32> to vector<256x256xf32>
    %cst_47 = arith.constant dense<0.000000e+00> : vector<8x256xf32>
    %61 = tpu.matmul %58, %60, %cst_47 {dimension_numbers = #tpu.dot_dimension_numbers<[1], [0], [0], [1], [0, 0, 1, 1], [], []>} : vector<8x256xf32>, vector<256x256xf32>, vector<8x256xf32> -> vector<8x256xf32>
    %c1_48 = arith.constant 1 : index
    %c0_49 = arith.constant 0 : index
    %c0_50 = arith.constant 0 : index
    %62 = vector.load %arg7[%c1_48, %c0_49, %c0_50] : memref<2x1x256xf32, #tpu.memory_space<vmem>>, vector<1x1x256xf32>
    %63 = vector.shape_cast %62 : vector<1x1x256xf32> to vector<1x256xf32>
    %64 = vector.broadcast %63 : vector<1x256xf32> to vector<8x256xf32>
    %65 = arith.addf %61, %64 : vector<8x256xf32>
    %cst_51 = arith.constant 0.000000e+00 : f32
    %66 = vector.broadcast %cst_51 : f32 to vector<8x256xf32>
    %67 = arith.maximumf %65, %66 : vector<8x256xf32>
    %c1_52 = arith.constant 1 : index
    %c0_53 = arith.constant 0 : index
    %c0_54 = arith.constant 0 : index
    %68 = vector.load %arg8[%c1_52, %c0_53, %c0_54] : memref<2x256x256xf32, #tpu.memory_space<vmem>>, vector<1x256x256xf32>
    %69 = vector.shape_cast %68 : vector<1x256x256xf32> to vector<256x256xf32>
    %cst_55 = arith.constant dense<0.000000e+00> : vector<8x256xf32>
    %70 = tpu.matmul %67, %69, %cst_55 {dimension_numbers = #tpu.dot_dimension_numbers<[1], [0], [0], [1], [0, 0, 1, 1], [], []>} : vector<8x256xf32>, vector<256x256xf32>, vector<8x256xf32> -> vector<8x256xf32>
    %c1_56 = arith.constant 1 : index
    %c0_57 = arith.constant 0 : index
    %c0_58 = arith.constant 0 : index
    %71 = vector.load %arg9[%c1_56, %c0_57, %c0_58] : memref<2x1x256xf32, #tpu.memory_space<vmem>>, vector<1x1x256xf32>
    %72 = vector.shape_cast %71 : vector<1x1x256xf32> to vector<1x256xf32>
    %73 = vector.broadcast %72 : vector<1x256xf32> to vector<8x256xf32>
    %74 = arith.addf %70, %73 : vector<8x256xf32>
    %75 = vector.extract_strided_slice %74 {offsets = [0, 0], sizes = [1, 256], strides = [1, 1]} : vector<8x256xf32> to vector<1x256xf32>
    %c0_59 = arith.constant 0 : index
    %c0_60 = arith.constant 0 : index
    %76 = vector.load %arg10[%c0_59, %c0_60] : memref<8x256xf32, #tpu.memory_space<vmem>>, vector<8x256xf32>
    %77 = vector.broadcast %37 : vector<1x256xf32> to vector<8x256xf32>
    %78 = arith.mulf %76, %77 : vector<8x256xf32>
    %79 = vector.broadcast %75 : vector<1x256xf32> to vector<8x256xf32>
    %80 = arith.addf %78, %79 : vector<8x256xf32>
    %c0_61 = arith.constant 0 : index
    %c0_62 = arith.constant 0 : index
    %81 = vector.load %arg11[%c0_61, %c0_62] : memref<8x256xf32, #tpu.memory_space<vmem>>, vector<8x256xf32>
    tpu.vector_store %arg11[%c0_61, %c0_62], %80 {strides = array<i32>} : memref<8x256xf32, #tpu.memory_space<vmem>>, vector<8x256xf32>,
    return
  }
  func.func @transform_0(%arg0: i32) -> i32 {
    %c0_i32 = arith.constant 0 : i32
    %c0_i32_0 = arith.constant 0 : i32
    return %c0_i32 : i32
  }
  func.func @transform_1(%arg0: i32) -> (i32, i32, i32) {
    %c0_i32 = arith.constant 0 : i32
    %c0_i32_0 = arith.constant 0 : i32
    %c0_i32_1 = arith.constant 0 : i32
    %c0_i32_2 = arith.constant 0 : i32
    return %c0_i32, %c0_i32_0, %c0_i32_1 : i32, i32, i32
  }
  func.func @transform_2(%arg0: i32) -> (i32, i32, i32) {
    %c0_i32 = arith.constant 0 : i32
    %c0_i32_0 = arith.constant 0 : i32
    %c0_i32_1 = arith.constant 0 : i32
    %c0_i32_2 = arith.constant 0 : i32
    return %c0_i32, %c0_i32_0, %c0_i32_1 : i32, i32, i32
  }
  func.func @transform_3(%arg0: i32) -> (i32, i32, i32) {
    %c0_i32 = arith.constant 0 : i32
    %c0_i32_0 = arith.constant 0 : i32
    %c0_i32_1 = arith.constant 0 : i32
    %c0_i32_2 = arith.constant 0 : i32
    return %c0_i32, %c0_i32_0, %c0_i32_1 : i32, i32, i32
  }
  func.func @transform_4(%arg0: i32) -> (i32, i32, i32) {
    %c0_i32 = arith.constant 0 : i32
    %c0_i32_0 = arith.constant 0 : i32
    %c0_i32_1 = arith.constant 0 : i32
    %c0_i32_2 = arith.constant 0 : i32
    return %c0_i32, %c0_i32_0, %c0_i32_1 : i32, i32, i32
  }
  func.func @transform_5(%arg0: i32) -> (i32, i32, i32) {
    %c0_i32 = arith.constant 0 : i32
    %c0_i32_0 = arith.constant 0 : i32
    %c0_i32_1 = arith.constant 0 : i32
    %c0_i32_2 = arith.constant 0 : i32
    return %c0_i32, %c0_i32_0, %c0_i32_1 : i32, i32, i32
  }
  func.func @transform_6(%arg0: i32) -> (i32, i32, i32) {
    %c0_i32 = arith.constant 0 : i32
    %c0_i32_0 = arith.constant 0 : i32
    %c0_i32_1 = arith.constant 0 : i32
    %c0_i32_2 = arith.constant 0 : i32
    return %c0_i32, %c0_i32_0, %c0_i32_1 : i32, i32, i32
  }
  func.func @transform_7(%arg0: i32) -> (i32, i32, i32) {
    %c0_i32 = arith.constant 0 : i32
    %c0_i32_0 = arith.constant 0 : i32
    %c0_i32_1 = arith.constant 0 : i32
    %c0_i32_2 = arith.constant 0 : i32
    return %c0_i32, %c0_i32_0, %c0_i32_1 : i32, i32, i32
  }
  func.func @transform_8(%arg0: i32) -> (i32, i32, i32) {
    %c0_i32 = arith.constant 0 : i32
    %c0_i32_0 = arith.constant 0 : i32
    %c0_i32_1 = arith.constant 0 : i32
    %c0_i32_2 = arith.constant 0 : i32
    return %c0_i32, %c0_i32_0, %c0_i32_1 : i32, i32, i32
  }
  func.func @transform_9(%arg0: i32) -> (i32, i32) {
    %c0_i32 = arith.constant 0 : i32
    %c0_i32_0 = arith.constant 0 : i32
    return %arg0, %c0_i32 : i32, i32
  }
  func.func @transform_10(%arg0: i32) -> (i32, i32) {
    %c0_i32 = arith.constant 0 : i32
    %c0_i32_0 = arith.constant 0 : i32
    return %arg0, %c0_i32 : i32, i32
  }
}

</mosaic_0001>

<llo_original>
// kernel: tpu_custom_call.1
$region0: #{tpu_custom_call.1}
  #allocation0 [shape = 'u32[]', space=smem, size = 0x4, offset = 0x4, fixed_abs, tag = 'smem constant byte address 0x4 - core index']
  #allocation1 [shape = 'u32[144,128]{1,0:T(1,128)}', space=vmem, size = 0x12000, scoped, tag = 'internal scratch']
  #allocation2 [shape = 'f32[1]{0:T(128)S(6)}', space=smem, size = 0x200, scoped, tag = 'scoped memory for tpu_custom_call.1']
  %s0 = inlined_call_operand.<no memory space> [shape: f32[1], index: 0, kind: input, shape index: {}]
  %s1 = inlined_call_operand.hbm [shape: f32[2,1,256], index: 1, kind: input, shape index: {}]
  %s2 = inlined_call_operand.vmem [shape: f32[2,1,256], index: 2, kind: input, shape index: {}]
  %s3 = inlined_call_operand.hbm [shape: f32[2,256,256], index: 3, kind: input, shape index: {}]
  %s4 = inlined_call_operand.vmem [shape: f32[2,1,256], index: 4, kind: input, shape index: {}]
  %s5 = inlined_call_operand.hbm [shape: f32[2,256,256], index: 5, kind: input, shape index: {}]
  %s6 = inlined_call_operand.vmem [shape: f32[2,1,256], index: 6, kind: input, shape index: {}]
  %s7 = inlined_call_operand.hbm [shape: f32[2,256,256], index: 7, kind: input, shape index: {}]
  %s8 = inlined_call_operand.hbm [shape: f32[2,1,256], index: 8, kind: input, shape index: {}]
  %s9 = inlined_call_operand.vmem [shape: f32[8,256], index: 9, kind: input, shape index: {}]
  %s10 = inlined_call_operand.hbm [shape: f32[8,256], index: 10, kind: output, shape index: {}]
  %s11 = sld [smem:[#allocation0]]
  $region70: #{tpu_custom_call.1} parent=0
    _
  %s13 = ssub.s32 1, %s11
  %s14 = scalar_select 0, %s13, %s11
  %15 = sst [smem:[#allocation2]] %s0
  $region1: #{tpu_custom_call.1} parent=0
    #allocation3 [shape = 'u8[2048]{0}', space=vmem, size = 0x800, scoped, tag = 'input window, operand 1, single buffered']
    #allocation4 [shape = 's32[1]{0}', space=sflag, size = 0x4, scoped, tag = 'scoped memory for tpu_custom_call.1']
    #allocation5 [shape = 's32[1]{0}', space=sflag, size = 0x4, scoped, tag = 'scoped memory for tpu_custom_call.1']
    #allocation6 [shape = 'u8[524288]{0}', space=vmem, size = 0x80000, scoped, tag = 'input window, operand 3, single buffered']
    #allocation7 [shape = 's32[1]{0}', space=sflag, size = 0x4, scoped, tag = 'scoped memory for tpu_custom_call.1']
    #allocation8 [shape = 'u8[524288]{0}', space=vmem, size = 0x80000, scoped, tag = 'input window, operand 5, single buffered']
    #allocation9 [shape = 'u8[524288]{0}', space=vmem, size = 0x80000, scoped, tag = 'input window, operand 7, single buffered']
    #allocation10 [shape = 's32[1]{0}', space=sflag, size = 0x4, scoped, tag = 'scoped memory for tpu_custom_call.1']
    #allocation11 [shape = 'u8[2048]{0}', space=vmem, size = 0x800, scoped, tag = 'input window, operand 8, single buffered']
    #allocation12 [shape = 'u8[8192]{0}', space=vmem, size = 0x2000, scoped, tag = 'output window, operand 0, single buffered']
    %16 = vsyncpa [#allocation4], 0
    %17 = vsyncpa [#allocation7], 0
    %18 = vsyncpa [#allocation10], 0
    %19 = vsyncpa [#allocation5], 0
    // Predicated region
    $region2: #{tpu_custom_call.1} parent=1 // pred_check
      _
    $region3: #{tpu_custom_call.1} parent=1 // pred_check_branch
      %21 = sbr.rel (0) target = $region5
    $region4: #{tpu_custom_call.1} parent=1 // pred_region
      _
    $region5: #{tpu_custom_call.1} parent=1 // pred_fallthru
      _
    // Predicated region
    $region6: #{tpu_custom_call.1} parent=1 // pred_check
      _
    $region7: #{tpu_custom_call.1} parent=1 // pred_check_branch
      %23 = sbr.rel (0) target = $region9
    $region8: #{tpu_custom_call.1} parent=1 // pred_region
      %s25 = ssub.s32 64, 64
      %26 = vsyncadd [#allocation4], %s25
      %s27 = sshll.u32 [#allocation3], 4
      %s28 = int_to_ptr.vmem [resolvable:$true] %s27
      %33 = dma.hbm_to_vmem [thread:$0]  %s1, 64, %s28, [#allocation4], 32, 32, 2
    $region9: #{tpu_custom_call.1} parent=1 // pred_fallthru
      _
    // Predicated region
    $region10: #{tpu_custom_call.1} parent=1 // pred_check
      _
    $region11: #{tpu_custom_call.1} parent=1 // pred_check_branch
      %35 = sbr.rel (0) target = $region13
    $region12: #{tpu_custom_call.1} parent=1 // pred_region
      _
    $region13: #{tpu_custom_call.1} parent=1 // pred_fallthru
      _
    // Predicated region
    $region14: #{tpu_custom_call.1} parent=1 // pred_check
      _
    $region15: #{tpu_custom_call.1} parent=1 // pred_check_branch
      %37 = sbr.rel (0) target = $region17
    $region16: #{tpu_custom_call.1} parent=1 // pred_region
      %s39 = ssub.s32 16384, 16384
      %40 = vsyncadd [#allocation7], %s39
      %s41 = sshll.u32 [#allocation6], 4
      %s42 = int_to_ptr.vmem [resolvable:$true] %s41
      %47 = dma.hbm_to_vmem [thread:$0]  %s3, 16384, %s42, [#allocation7], 256, 256, 16
    $region17: #{tpu_custom_call.1} parent=1 // pred_fallthru
      _
    // Predicated region
    $region18: #{tpu_custom_call.1} parent=1 // pred_check
      _
    $region19: #{tpu_custom_call.1} parent=1 // pred_check_branch
      %49 = sbr.rel (0) target = $region21
    $region20: #{tpu_custom_call.1} parent=1 // pred_region
      _
    $region21: #{tpu_custom_call.1} parent=1 // pred_fallthru
      _
    // Predicated region
    $region22: #{tpu_custom_call.1} parent=1 // pred_check
      _
    $region23: #{tpu_custom_call.1} parent=1 // pred_check_branch
      %51 = sbr.rel (0) target = $region25
    $region24: #{tpu_custom_call.1} parent=1 // pred_region
      %s53 = ssub.s32 16384, 16384
      %54 = vsyncadd [#allocation7], %s53
      %s55 = sshll.u32 [#allocation8], 4
      %s56 = int_to_ptr.vmem [resolvable:$true] %s55
      %61 = dma.hbm_to_vmem [thread:$0]  %s5, 16384, %s56, [#allocation7], 256, 256, 16
    $region25: #{tpu_custom_call.1} parent=1 // pred_fallthru
      _
    // Predicated region
    $region26: #{tpu_custom_call.1} parent=1 // pred_check
      _
    $region27: #{tpu_custom_call.1} parent=1 // pred_check_branch
      %63 = sbr.rel (0) target = $region29
    $region28: #{tpu_custom_call.1} parent=1 // pred_region
      _
    $region29: #{tpu_custom_call.1} parent=1 // pred_fallthru
      _
    // Predicated region
    $region30: #{tpu_custom_call.1} parent=1 // pred_check
      _
    $region31: #{tpu_custom_call.1} parent=1 // pred_check_branch
      %65 = sbr.rel (0) target = $region33
    $region32: #{tpu_custom_call.1} parent=1 // pred_region
      %s67 = ssub.s32 16384, 16384
      %68 = vsyncadd [#allocation10], %s67
      %s69 = sshll.u32 [#allocation9], 4
      %s70 = int_to_ptr.vmem [resolvable:$true] %s69
      %75 = dma.hbm_to_vmem [thread:$0]  %s7, 16384, %s70, [#allocation10], 256, 256, 16
    $region33: #{tpu_custom_call.1} parent=1 // pred_fallthru
      _
    // Predicated region
    $region34: #{tpu_custom_call.1} parent=1 // pred_check
      _
    $region35: #{tpu_custom_call.1} parent=1 // pred_check_branch
      %77 = sbr.rel (0) target = $region37
    $region36: #{tpu_custom_call.1} parent=1 // pred_region
      %s79 = ssub.s32 64, 64
      %80 = vsyncadd [#allocation10], %s79
      %s81 = sshll.u32 [#allocation11], 4
      %s82 = int_to_ptr.vmem [resolvable:$true] %s81
      %87 = dma.hbm_to_vmem [thread:$0]  %s8, 64, %s82, [#allocation10], 32, 32, 2
    $region37: #{tpu_custom_call.1} parent=1 // pred_fallthru
      _
    // Predicated region
    $region38: #{tpu_custom_call.1} parent=1 // pred_check
      _
    $region39: #{tpu_custom_call.1} parent=1 // pred_check_branch
      %89 = sbr.rel (0) target = $region41
    $region40: #{tpu_custom_call.1} parent=1 // pred_region
      _
    $region41: #{tpu_custom_call.1} parent=1 // pred_fallthru
      _
    // Predicated region
    $region42: #{tpu_custom_call.1} parent=1 // pred_check
      _
    $region43: #{tpu_custom_call.1} parent=1 // pred_check_branch
      %91 = sbr.rel (0) target = $region45
    $region44: #{tpu_custom_call.1} parent=1 // pred_region
      %92 = dma.done [#allocation4], 64
    $region45: #{tpu_custom_call.1} parent=1 // pred_fallthru
      _
    // Predicated region
    $region46: #{tpu_custom_call.1} parent=1 // pred_check
      _
    $region47: #{tpu_custom_call.1} parent=1 // pred_check_branch
      %94 = sbr.rel (0) target = $region49
    $region48: #{tpu_custom_call.1} parent=1 // pred_region
      %95 = dma.done [#allocation7], 16384
    $region49: #{tpu_custom_call.1} parent=1 // pred_fallthru
      _
    // Predicated region
    $region50: #{tpu_custom_call.1} parent=1 // pred_check
      _
    $region51: #{tpu_custom_call.1} parent=1 // pred_check_branch
      %97 = sbr.rel (0) target = $region53
    $region52: #{tpu_custom_call.1} parent=1 // pred_region
      %98 = dma.done [#allocation7], 16384
    $region53: #{tpu_custom_call.1} parent=1 // pred_fallthru
      _
    // Predicated region
    $region54: #{tpu_custom_call.1} parent=1 // pred_check
      _
    $region55: #{tpu_custom_call.1} parent=1 // pred_check_branch
      %100 = sbr.rel (0) target = $region57
    $region56: #{tpu_custom_call.1} parent=1 // pred_region
      %101 = dma.done [#allocation10], 16384
    $region57: #{tpu_custom_call.1} parent=1 // pred_fallthru
      _
    // Predicated region
    $region58: #{tpu_custom_call.1} parent=1 // pred_check
      _
    $region59: #{tpu_custom_call.1} parent=1 // pred_check_branch
      %103 = sbr.rel (0) target = $region61
    $region60: #{tpu_custom_call.1} parent=1 // pred_region
      %104 = dma.done [#allocation10], 64
    $region61: #{tpu_custom_call.1} parent=1 // pred_fallthru
      _
    %v105 = vld [vmem:[#allocation3] sm:$0x3]
    %v106 = vld [vmem:[%s2] sm:$0x3]
    %s107 = sld [smem:[#allocation2]]
    %v108 = vstv %s107
    %v109 = vmul.f32 %v108, %v105
    %v110 = vadd.f32 %v106, %v109
    %v111 = vmax.f32 %v110, 0.0
    %v113 = vlaneseq
    %v114 = vshrl.u32 %v113, 7
    %v115 = vsub.s32 0, %v114
    %v116 = vrot.slane %v111, %v115
    %v117 = vlaneseq
    %v118 = vshrl.u32 %v117, 7
    %v119 = vsub.s32 1, %v118
    %v120 = vrot.slane %v111, %v119
    %v123 = vld [vmem:[#allocation6] sm:$0xff]
    %v124 = vld [vmem:[#allocation6 + $0x8] sm:$0xff]
    %v125 = vld [vmem:[#allocation6 + $0x10] sm:$0xff]
    %v126 = vld [vmem:[#allocation6 + $0x18] sm:$0xff]
    %v127 = vld [vmem:[#allocation6 + $0x20] sm:$0xff]
    %v128 = vld [vmem:[#allocation6 + $0x28] sm:$0xff]
    %v129 = vld [vmem:[#allocation6 + $0x30] sm:$0xff]
    %v130 = vld [vmem:[#allocation6 + $0x38] sm:$0xff]
    %v131 = vld [vmem:[#allocation6 + $0x40] sm:$0xff]
    %v132 = vld [vmem:[#allocation6 + $0x48] sm:$0xff]
    %v133 = vld [vmem:[#allocation6 + $0x50] sm:$0xff]
    %v134 = vld [vmem:[#allocation6 + $0x58] sm:$0xff]
    %v135 = vld [vmem:[#allocation6 + $0x60] sm:$0xff]
    %v136 = vld [vmem:[#allocation6 + $0x68] sm:$0xff]
    %v137 = vld [vmem:[#allocation6 + $0x70] sm:$0xff]
    %v138 = vld [vmem:[#allocation6 + $0x78] sm:$0xff]
    %v139 = vld [vmem:[#allocation6 + $0x80] sm:$0xff]
    %v140 = vld [vmem:[#allocation6 + $0x88] sm:$0xff]
    %v141 = vld [vmem:[#allocation6 + $0x90] sm:$0xff]
    %v142 = vld [vmem:[#allocation6 + $0x98] sm:$0xff]
    %v143 = vld [vmem:[#allocation6 + $0xa0] sm:$0xff]
    %v144 = vld [vmem:[#allocation6 + $0xa8] sm:$0xff]
    %v145 = vld [vmem:[#allocation6 + $0xb0] sm:$0xff]
    %v146 = vld [vmem:[#allocation6 + $0xb8] sm:$0xff]
    %v147 = vld [vmem:[#allocation6 + $0xc0] sm:$0xff]
    %v148 = vld [vmem:[#allocation6 + $0xc8] sm:$0xff]
    %v149 = vld [vmem:[#allocation6 + $0xd0] sm:$0xff]
    %v150 = vld [vmem:[#allocation6 + $0xd8] sm:$0xff]
    %v151 = vld [vmem:[#allocation6 + $0xe0] sm:$0xff]
    %v152 = vld [vmem:[#allocation6 + $0xe8] sm:$0xff]
    %v153 = vld [vmem:[#allocation6 + $0xf0] sm:$0xff]
    %v154 = vld [vmem:[#allocation6 + $0xf8] sm:$0xff]
    %v155 = vld [vmem:[#allocation6 + $0x100] sm:$0xff]
    %v156 = vld [vmem:[#allocation6 + $0x108] sm:$0xff]
    %v157 = vld [vmem:[#allocation6 + $0x110] sm:$0xff]
    %v158 = vld [vmem:[#allocation6 + $0x118] sm:$0xff]
    %v159 = vld [vmem:[#allocation6 + $0x120] sm:$0xff]
    %v160 = vld [vmem:[#allocation6 + $0x128] sm:$0xff]
    %v161 = vld [vmem:[#allocation6 + $0x130] sm:$0xff]
    %v162 = vld [vmem:[#allocation6 + $0x138] sm:$0xff]
    %v163 = vld [vmem:[#allocation6 + $0x140] sm:$0xff]
    %v164 = vld [vmem:[#allocation6 + $0x148] sm:$0xff]
    %v165 = vld [vmem:[#allocation6 + $0x150] sm:$0xff]
    %v166 = vld [vmem:[#allocation6 + $0x158] sm:$0xff]
    %v167 = vld [vmem:[#allocation6 + $0x160] sm:$0xff]
    %v168 = vld [vmem:[#allocation6 + $0x168] sm:$0xff]
    %v169 = vld [vmem:[#allocation6 + $0x170] sm:$0xff]
    %v170 = vld [vmem:[#allocation6 + $0x178] sm:$0xff]
    %v171 = vld [vmem:[#allocation6 + $0x180] sm:$0xff]
    %v172 = vld [vmem:[#allocation6 + $0x188] sm:$0xff]
    %v173 = vld [vmem:[#allocation6 + $0x190] sm:$0xff]
    %v174 = vld [vmem:[#allocation6 + $0x198] sm:$0xff]
    %v175 = vld [vmem:[#allocation6 + $0x1a0] sm:$0xff]
    %v176 = vld [vmem:[#allocation6 + $0x1a8] sm:$0xff]
    %v177 = vld [vmem:[#allocation6 + $0x1b0] sm:$0xff]
    %v178 = vld [vmem:[#allocation6 + $0x1b8] sm:$0xff]
    %v179 = vld [vmem:[#allocation6 + $0x1c0] sm:$0xff]
    %v180 = vld [vmem:[#allocation6 + $0x1c8] sm:$0xff]
    %v181 = vld [vmem:[#allocation6 + $0x1d0] sm:$0xff]
    %v182 = vld [vmem:[#allocation6 + $0x1d8] sm:$0xff]
    %v183 = vld [vmem:[#allocation6 + $0x1e0] sm:$0xff]
    %v184 = vld [vmem:[#allocation6 + $0x1e8] sm:$0xff]
    %v185 = vld [vmem:[#allocation6 + $0x1f0] sm:$0xff]
    %v186 = vld [vmem:[#allocation6 + $0x1f8] sm:$0xff]
    %v187 = vld [vmem:[%s4] sm:$0x3]
    %v189 = vlaneseq
    %v190 = vshrl.u32 %v189, 7
    %v191 = vsub.s32 0, %v190
    %v192 = vrot.slane %v187, %v191
    %v193 = vlaneseq
    %v194 = vshrl.u32 %v193, 7
    %v195 = vsub.s32 1, %v194
    %v196 = vrot.slane %v187, %v195
    %199 = vmatprep.subr.mxu0 %v124
    %200 = vmatpush1.msra.mxu0 %v123
    %201 = vmatprep.subr.mxu0 %v126
    %202 = vmatpush1.msra.mxu0 %v125
    %203 = vmatprep.subr.mxu0 %v128
    %204 = vmatpush1.msra.mxu0 %v127
    %205 = vmatprep.subr.mxu0 %v130
    %206 = vmatpush1.msra.mxu0 %v129
    %207 = vmatprep.subr.mxu0 %v132
    %208 = vmatpush1.msra.mxu0 %v131
    %209 = vmatprep.subr.mxu0 %v134
    %210 = vmatpush1.msra.mxu0 %v133
    %211 = vmatprep.subr.mxu0 %v136
    %212 = vmatpush1.msra.mxu0 %v135
    %213 = vmatprep.subr.mxu0 %v138
    %214 = vmatpush1.msra.mxu0 %v137
    %215 = vmatprep.subr.mxu0 %v140
    %216 = vmatpush1.msra.mxu0 %v139
    %217 = vmatprep.subr.mxu0 %v142
    %218 = vmatpush1.msra.mxu0 %v141
    %219 = vmatprep.subr.mxu0 %v144
    %220 = vmatpush1.msra.mxu0 %v143
    %221 = vmatprep.subr.mxu0 %v146
    %222 = vmatpush1.msra.mxu0 %v145
    %223 = vmatprep.subr.mxu0 %v148
    %224 = vmatpush1.msra.mxu0 %v147
    %225 = vmatprep.subr.mxu0 %v150
    %226 = vmatpush1.msra.mxu0 %v149
    %227 = vmatprep.subr.mxu0 %v152
    %228 = vmatpush1.msra.mxu0 %v151
    %229 = vmatprep.subr.mxu0 %v154
    %230 = vmatpush1.msra.mxu0 %v153
    %231 = vmatprep.subr.mxu0 %v156
    %232 = vmatpush1.msra.mxu0 %v155
    %233 = vmatprep.subr.mxu0 %v158
    %234 = vmatpush1.msra.mxu0 %v157
    %235 = vmatprep.subr.mxu0 %v160
    %236 = vmatpush1.msra.mxu0 %v159
    %237 = vmatprep.subr.mxu0 %v162
    %238 = vmatpush1.msra.mxu0 %v161
    %239 = vmatprep.subr.mxu0 %v164
    %240 = vmatpush1.msra.mxu0 %v163
    %241 = vmatprep.subr.mxu0 %v166
    %242 = vmatpush1.msra.mxu0 %v165
    %243 = vmatprep.subr.mxu0 %v168
    %244 = vmatpush1.msra.mxu0 %v167
    %245 = vmatprep.subr.mxu0 %v170
    %246 = vmatpush1.msra.mxu0 %v169
    %247 = vmatprep.subr.mxu0 %v172
    %248 = vmatpush1.msra.mxu0 %v171
    %249 = vmatprep.subr.mxu0 %v174
    %250 = vmatpush1.msra.mxu0 %v173
    %251 = vmatprep.subr.mxu0 %v176
    %252 = vmatpush1.msra.mxu0 %v175
    %253 = vmatprep.subr.mxu0 %v178
    %254 = vmatpush1.msra.mxu0 %v177
    %255 = vmatprep.subr.mxu0 %v180
    %256 = vmatpush1.msra.mxu0 %v179
    %257 = vmatprep.subr.mxu0 %v182
    %258 = vmatpush1.msra.mxu0 %v181
    %259 = vmatprep.subr.mxu0 %v184
    %260 = vmatpush1.msra.mxu0 %v183
    %261 = vmatprep.subr.mxu0 %v186
    %262 = vmatpush1.msra.mxu0 %v185
    %263 = vmatprep.mubr.f32.mxu0 %v120
    %264 = vmatmul.mubr.f32.gmra.mrb[0].mxu0 %v116
    %v265 = vpop.f32.mrb[0].mxu0
    %v266 = vadd.f32 %v192, %v265
    %v267 = vpop.f32.mrb[0].mxu0
    %v268 = vadd.f32 %v196, %v267
    %269 = vdwg.mxu0
    %v270 = vmax.f32 %v266, 0.0
    %v271 = vmax.f32 %v268, 0.0
    %v272 = vld [vmem:[#allocation8] sm:$0xff]
    %v273 = vld [vmem:[#allocation8 + $0x8] sm:$0xff]
    %v274 = vld [vmem:[#allocation8 + $0x10] sm:$0xff]
    %v275 = vld [vmem:[#allocation8 + $0x18] sm:$0xff]
    %v276 = vld [vmem:[#allocation8 + $0x20] sm:$0xff]
    %v277 = vld [vmem:[#allocation8 + $0x28] sm:$0xff]
    %v278 = vld [vmem:[#allocation8 + $0x30] sm:$0xff]
    %v279 = vld [vmem:[#allocation8 + $0x38] sm:$0xff]
    %v280 = vld [vmem:[#allocation8 + $0x40] sm:$0xff]
    %v281 = vld [vmem:[#allocation8 + $0x48] sm:$0xff]
    %v282 = vld [vmem:[#allocation8 + $0x50] sm:$0xff]
    %v283 = vld [vmem:[#allocation8 + $0x58] sm:$0xff]
    %v284 = vld [vmem:[#allocation8 + $0x60] sm:$0xff]
    %v285 = vld [vmem:[#allocation8 + $0x68] sm:$0xff]
    %v286 = vld [vmem:[#allocation8 + $0x70] sm:$0xff]
    %v287 = vld [vmem:[#allocation8 + $0x78] sm:$0xff]
    %v288 = vld [vmem:[#allocation8 + $0x80] sm:$0xff]
    %v289 = vld [vmem:[#allocation8 + $0x88] sm:$0xff]
    %v290 = vld [vmem:[#allocation8 + $0x90] sm:$0xff]
    %v291 = vld [vmem:[#allocation8 + $0x98] sm:$0xff]
    %v292 = vld [vmem:[#allocation8 + $0xa0] sm:$0xff]
    %v293 = vld [vmem:[#allocation8 + $0xa8] sm:$0xff]
    %v294 = vld [vmem:[#allocation8 + $0xb0] sm:$0xff]
    %v295 = vld [vmem:[#allocation8 + $0xb8] sm:$0xff]
    %v296 = vld [vmem:[#allocation8 + $0xc0] sm:$0xff]
    %v297 = vld [vmem:[#allocation8 + $0xc8] sm:$0xff]
    %v298 = vld [vmem:[#allocation8 + $0xd0] sm:$0xff]
    %v299 = vld [vmem:[#allocation8 + $0xd8] sm:$0xff]
    %v300 = vld [vmem:[#allocation8 + $0xe0] sm:$0xff]
    %v301 = vld [vmem:[#allocation8 + $0xe8] sm:$0xff]
    %v302 = vld [vmem:[#allocation8 + $0xf0] sm:$0xff]
    %v303 = vld [vmem:[#allocation8 + $0xf8] sm:$0xff]
    %v304 = vld [vmem:[#allocation8 + $0x100] sm:$0xff]
    %v305 = vld [vmem:[#allocation8 + $0x108] sm:$0xff]
    %v306 = vld [vmem:[#allocation8 + $0x110] sm:$0xff]
    %v307 = vld [vmem:[#allocation8 + $0x118] sm:$0xff]
    %v308 = vld [vmem:[#allocation8 + $0x120] sm:$0xff]
    %v309 = vld [vmem:[#allocation8 + $0x128] sm:$0xff]
    %v310 = vld [vmem:[#allocation8 + $0x130] sm:$0xff]
    %v311 = vld [vmem:[#allocation8 + $0x138] sm:$0xff]
    %v312 = vld [vmem:[#allocation8 + $0x140] sm:$0xff]
    %v313 = vld [vmem:[#allocation8 + $0x148] sm:$0xff]
    %v314 = vld [vmem:[#allocation8 + $0x150] sm:$0xff]
    %v315 = vld [vmem:[#allocation8 + $0x158] sm:$0xff]
    %v316 = vld [vmem:[#allocation8 + $0x160] sm:$0xff]
    %v317 = vld [vmem:[#allocation8 + $0x168] sm:$0xff]
    %v318 = vld [vmem:[#allocation8 + $0x170] sm:$0xff]
    %v319 = vld [vmem:[#allocation8 + $0x178] sm:$0xff]
    %v320 = vld [vmem:[#allocation8 + $0x180] sm:$0xff]
    %v321 = vld [vmem:[#allocation8 + $0x188] sm:$0xff]
    %v322 = vld [vmem:[#allocation8 + $0x190] sm:$0xff]
    %v323 = vld [vmem:[#allocation8 + $0x198] sm:$0xff]
    %v324 = vld [vmem:[#allocation8 + $0x1a0] sm:$0xff]
    %v325 = vld [vmem:[#allocation8 + $0x1a8] sm:$0xff]
    %v326 = vld [vmem:[#allocation8 + $0x1b0] sm:$0xff]
    %v327 = vld [vmem:[#allocation8 + $0x1b8] sm:$0xff]
    %v328 = vld [vmem:[#allocation8 + $0x1c0] sm:$0xff]
    %v329 = vld [vmem:[#allocation8 + $0x1c8] sm:$0xff]
    %v330 = vld [vmem:[#allocation8 + $0x1d0] sm:$0xff]
    %v331 = vld [vmem:[#allocation8 + $0x1d8] sm:$0xff]
    %v332 = vld [vmem:[#allocation8 + $0x1e0] sm:$0xff]
    %v333 = vld [vmem:[#allocation8 + $0x1e8] sm:$0xff]
    %v334 = vld [vmem:[#allocation8 + $0x1f0] sm:$0xff]
    %v335 = vld [vmem:[#allocation8 + $0x1f8] sm:$0xff]
    %v336 = vld [vmem:[%s6] sm:$0x3]
    %v338 = vlaneseq
    %v339 = vshrl.u32 %v338, 7
    %v340 = vsub.s32 0, %v339
    %v341 = vrot.slane %v336, %v340
    %v342 = vlaneseq
    %v343 = vshrl.u32 %v342, 7
    %v344 = vsub.s32 1, %v343
    %v345 = vrot.slane %v336, %v344
    %348 = vmatprep.subr.mxu0 %v273
    %349 = vmatpush1.msra.mxu0 %v272
    %350 = vmatprep.subr.mxu0 %v275
    %351 = vmatpush1.msra.mxu0 %v274
    %352 = vmatprep.subr.mxu0 %v277
    %353 = vmatpush1.msra.mxu0 %v276
    %354 = vmatprep.subr.mxu0 %v279
    %355 = vmatpush1.msra.mxu0 %v278
    %356 = vmatprep.subr.mxu0 %v281
    %357 = vmatpush1.msra.mxu0 %v280
    %358 = vmatprep.subr.mxu0 %v283
    %359 = vmatpush1.msra.mxu0 %v282
    %360 = vmatprep.subr.mxu0 %v285
    %361 = vmatpush1.msra.mxu0 %v284
    %362 = vmatprep.subr.mxu0 %v287
    %363 = vmatpush1.msra.mxu0 %v286
    %364 = vmatprep.subr.mxu0 %v289
    %365 = vmatpush1.msra.mxu0 %v288
    %366 = vmatprep.subr.mxu0 %v291
    %367 = vmatpush1.msra.mxu0 %v290
    %368 = vmatprep.subr.mxu0 %v293
    %369 = vmatpush1.msra.mxu0 %v292
    %370 = vmatprep.subr.mxu0 %v295
    %371 = vmatpush1.msra.mxu0 %v294
    %372 = vmatprep.subr.mxu0 %v297
    %373 = vmatpush1.msra.mxu0 %v296
    %374 = vmatprep.subr.mxu0 %v299
    %375 = vmatpush1.msra.mxu0 %v298
    %376 = vmatprep.subr.mxu0 %v301
    %377 = vmatpush1.msra.mxu0 %v300
    %378 = vmatprep.subr.mxu0 %v303
    %379 = vmatpush1.msra.mxu0 %v302
    %380 = vmatprep.subr.mxu0 %v305
    %381 = vmatpush1.msra.mxu0 %v304
    %382 = vmatprep.subr.mxu0 %v307
    %383 = vmatpush1.msra.mxu0 %v306
    %384 = vmatprep.subr.mxu0 %v309
    %385 = vmatpush1.msra.mxu0 %v308
    %386 = vmatprep.subr.mxu0 %v311
    %387 = vmatpush1.msra.mxu0 %v310
    %388 = vmatprep.subr.mxu0 %v313
    %389 = vmatpush1.msra.mxu0 %v312
    %390 = vmatprep.subr.mxu0 %v315
    %391 = vmatpush1.msra.mxu0 %v314
    %392 = vmatprep.subr.mxu0 %v317
    %393 = vmatpush1.msra.mxu0 %v316
    %394 = vmatprep.subr.mxu0 %v319
    %395 = vmatpush1.msra.mxu0 %v318
    %396 = vmatprep.subr.mxu0 %v321
    %397 = vmatpush1.msra.mxu0 %v320
    %398 = vmatprep.subr.mxu0 %v323
    %399 = vmatpush1.msra.mxu0 %v322
    %400 = vmatprep.subr.mxu0 %v325
    %401 = vmatpush1.msra.mxu0 %v324
    %402 = vmatprep.subr.mxu0 %v327
    %403 = vmatpush1.msra.mxu0 %v326
    %404 = vmatprep.subr.mxu0 %v329
    %405 = vmatpush1.msra.mxu0 %v328
    %406 = vmatprep.subr.mxu0 %v331
    %407 = vmatpush1.msra.mxu0 %v330
    %408 = vmatprep.subr.mxu0 %v333
    %409 = vmatpush1.msra.mxu0 %v332
    %410 = vmatprep.subr.mxu0 %v335
    %411 = vmatpush1.msra.mxu0 %v334
    %412 = vmatprep.mubr.f32.mxu0 %v271
    %413 = vmatmul.mubr.f32.gmra.mrb[0].mxu0 %v270
    %v414 = vpop.f32.mrb[0].mxu0
    %v415 = vadd.f32 %v341, %v414
    %v416 = vpop.f32.mrb[0].mxu0
    %v417 = vadd.f32 %v345, %v416
    %418 = vdwg.mxu0
    %v419 = vmax.f32 %v415, 0.0
    %v420 = vmax.f32 %v417, 0.0
    %v421 = vld [vmem:[#allocation9] sm:$0xff]
    %v422 = vld [vmem:[#allocation9 + $0x8] sm:$0xff]
    %v423 = vld [vmem:[#allocation9 + $0x10] sm:$0xff]
    %v424 = vld [vmem:[#allocation9 + $0x18] sm:$0xff]
    %v425 = vld [vmem:[#allocation9 + $0x20] sm:$0xff]
    %v426 = vld [vmem:[#allocation9 + $0x28] sm:$0xff]
    %v427 = vld [vmem:[#allocation9 + $0x30] sm:$0xff]
    %v428 = vld [vmem:[#allocation9 + $0x38] sm:$0xff]
    %v429 = vld [vmem:[#allocation9 + $0x40] sm:$0xff]
    %v430 = vld [vmem:[#allocation9 + $0x48] sm:$0xff]
    %v431 = vld [vmem:[#allocation9 + $0x50] sm:$0xff]
    %v432 = vld [vmem:[#allocation9 + $0x58] sm:$0xff]
    %v433 = vld [vmem:[#allocation9 + $0x60] sm:$0xff]
    %v434 = vld [vmem:[#allocation9 + $0x68] sm:$0xff]
    %v435 = vld [vmem:[#allocation9 + $0x70] sm:$0xff]
    %v436 = vld [vmem:[#allocation9 + $0x78] sm:$0xff]
    %v437 = vld [vmem:[#allocation9 + $0x80] sm:$0xff]
    %v438 = vld [vmem:[#allocation9 + $0x88] sm:$0xff]
    %v439 = vld [vmem:[#allocation9 + $0x90] sm:$0xff]
    %v440 = vld [vmem:[#allocation9 + $0x98] sm:$0xff]
    %v441 = vld [vmem:[#allocation9 + $0xa0] sm:$0xff]
    %v442 = vld [vmem:[#allocation9 + $0xa8] sm:$0xff]
    %v443 = vld [vmem:[#allocation9 + $0xb0] sm:$0xff]
    %v444 = vld [vmem:[#allocation9 + $0xb8] sm:$0xff]
    %v445 = vld [vmem:[#allocation9 + $0xc0] sm:$0xff]
    %v446 = vld [vmem:[#allocation9 + $0xc8] sm:$0xff]
    %v447 = vld [vmem:[#allocation9 + $0xd0] sm:$0xff]
    %v448 = vld [vmem:[#allocation9 + $0xd8] sm:$0xff]
    %v449 = vld [vmem:[#allocation9 + $0xe0] sm:$0xff]
    %v450 = vld [vmem:[#allocation9 + $0xe8] sm:$0xff]
    %v451 = vld [vmem:[#allocation9 + $0xf0] sm:$0xff]
    %v452 = vld [vmem:[#allocation9 + $0xf8] sm:$0xff]
    %v453 = vld [vmem:[#allocation9 + $0x100] sm:$0xff]
    %v454 = vld [vmem:[#allocation9 + $0x108] sm:$0xff]
    %v455 = vld [vmem:[#allocation9 + $0x110] sm:$0xff]
    %v456 = vld [vmem:[#allocation9 + $0x118] sm:$0xff]
    %v457 = vld [vmem:[#allocation9 + $0x120] sm:$0xff]
    %v458 = vld [vmem:[#allocation9 + $0x128] sm:$0xff]
    %v459 = vld [vmem:[#allocation9 + $0x130] sm:$0xff]
    %v460 = vld [vmem:[#allocation9 + $0x138] sm:$0xff]
    %v461 = vld [vmem:[#allocation9 + $0x140] sm:$0xff]
    %v462 = vld [vmem:[#allocation9 + $0x148] sm:$0xff]
    %v463 = vld [vmem:[#allocation9 + $0x150] sm:$0xff]
    %v464 = vld [vmem:[#allocation9 + $0x158] sm:$0xff]
    %v465 = vld [vmem:[#allocation9 + $0x160] sm:$0xff]
    %v466 = vld [vmem:[#allocation9 + $0x168] sm:$0xff]
    %v467 = vld [vmem:[#allocation9 + $0x170] sm:$0xff]
    %v468 = vld [vmem:[#allocation9 + $0x178] sm:$0xff]
    %v469 = vld [vmem:[#allocation9 + $0x180] sm:$0xff]
    %v470 = vld [vmem:[#allocation9 + $0x188] sm:$0xff]
    %v471 = vld [vmem:[#allocation9 + $0x190] sm:$0xff]
    %v472 = vld [vmem:[#allocation9 + $0x198] sm:$0xff]
    %v473 = vld [vmem:[#allocation9 + $0x1a0] sm:$0xff]
    %v474 = vld [vmem:[#allocation9 + $0x1a8] sm:$0xff]
    %v475 = vld [vmem:[#allocation9 + $0x1b0] sm:$0xff]
    %v476 = vld [vmem:[#allocation9 + $0x1b8] sm:$0xff]
    %v477 = vld [vmem:[#allocation9 + $0x1c0] sm:$0xff]
    %v478 = vld [vmem:[#allocation9 + $0x1c8] sm:$0xff]
    %v479 = vld [vmem:[#allocation9 + $0x1d0] sm:$0xff]
    %v480 = vld [vmem:[#allocation9 + $0x1d8] sm:$0xff]
    %v481 = vld [vmem:[#allocation9 + $0x1e0] sm:$0xff]
    %v482 = vld [vmem:[#allocation9 + $0x1e8] sm:$0xff]
    %v483 = vld [vmem:[#allocation9 + $0x1f0] sm:$0xff]
    %v484 = vld [vmem:[#allocation9 + $0x1f8] sm:$0xff]
    %v485 = vld [vmem:[#allocation11] sm:$0x3]
    %v487 = vlaneseq
    %v488 = vshrl.u32 %v487, 7
    %v489 = vsub.s32 0, %v488
    %v490 = vrot.slane %v485, %v489
    %v491 = vlaneseq
    %v492 = vshrl.u32 %v491, 7
    %v493 = vsub.s32 1, %v492
    %v494 = vrot.slane %v485, %v493
    %497 = vmatprep.subr.mxu0 %v422
    %498 = vmatpush1.msra.mxu0 %v421
    %499 = vmatprep.subr.mxu0 %v424
    %500 = vmatpush1.msra.mxu0 %v423
    %501 = vmatprep.subr.mxu0 %v426
    %502 = vmatpush1.msra.mxu0 %v425
    %503 = vmatprep.subr.mxu0 %v428
    %504 = vmatpush1.msra.mxu0 %v427
    %505 = vmatprep.subr.mxu0 %v430
    %506 = vmatpush1.msra.mxu0 %v429
    %507 = vmatprep.subr.mxu0 %v432
    %508 = vmatpush1.msra.mxu0 %v431
    %509 = vmatprep.subr.mxu0 %v434
    %510 = vmatpush1.msra.mxu0 %v433
    %511 = vmatprep.subr.mxu0 %v436
    %512 = vmatpush1.msra.mxu0 %v435
    %513 = vmatprep.subr.mxu0 %v438
    %514 = vmatpush1.msra.mxu0 %v437
    %515 = vmatprep.subr.mxu0 %v440
    %516 = vmatpush1.msra.mxu0 %v439
    %517 = vmatprep.subr.mxu0 %v442
    %518 = vmatpush1.msra.mxu0 %v441
    %519 = vmatprep.subr.mxu0 %v444
    %520 = vmatpush1.msra.mxu0 %v443
    %521 = vmatprep.subr.mxu0 %v446
    %522 = vmatpush1.msra.mxu0 %v445
    %523 = vmatprep.subr.mxu0 %v448
    %524 = vmatpush1.msra.mxu0 %v447
    %525 = vmatprep.subr.mxu0 %v450
    %526 = vmatpush1.msra.mxu0 %v449
    %527 = vmatprep.subr.mxu0 %v452
    %528 = vmatpush1.msra.mxu0 %v451
    %529 = vmatprep.subr.mxu0 %v454
    %530 = vmatpush1.msra.mxu0 %v453
    %531 = vmatprep.subr.mxu0 %v456
    %532 = vmatpush1.msra.mxu0 %v455
    %533 = vmatprep.subr.mxu0 %v458
    %534 = vmatpush1.msra.mxu0 %v457
    %535 = vmatprep.subr.mxu0 %v460
    %536 = vmatpush1.msra.mxu0 %v459
    %537 = vmatprep.subr.mxu0 %v462
    %538 = vmatpush1.msra.mxu0 %v461
    %539 = vmatprep.subr.mxu0 %v464
    %540 = vmatpush1.msra.mxu0 %v463
    %541 = vmatprep.subr.mxu0 %v466
    %542 = vmatpush1.msra.mxu0 %v465
    %543 = vmatprep.subr.mxu0 %v468
    %544 = vmatpush1.msra.mxu0 %v467
    %545 = vmatprep.subr.mxu0 %v470
    %546 = vmatpush1.msra.mxu0 %v469
    %547 = vmatprep.subr.mxu0 %v472
    %548 = vmatpush1.msra.mxu0 %v471
    %549 = vmatprep.subr.mxu0 %v474
    %550 = vmatpush1.msra.mxu0 %v473
    %551 = vmatprep.subr.mxu0 %v476
    %552 = vmatpush1.msra.mxu0 %v475
    %553 = vmatprep.subr.mxu0 %v478
    %554 = vmatpush1.msra.mxu0 %v477
    %555 = vmatprep.subr.mxu0 %v480
    %556 = vmatpush1.msra.mxu0 %v479
    %557 = vmatprep.subr.mxu0 %v482
    %558 = vmatpush1.msra.mxu0 %v481
    %559 = vmatprep.subr.mxu0 %v484
    %560 = vmatpush1.msra.mxu0 %v483
    %561 = vmatprep.mubr.f32.mxu0 %v420
    %562 = vmatmul.mubr.f32.gmra.mrb[0].mxu0 %v419
    %v563 = vpop.f32.mrb[0].mxu0
    %v564 = vadd.f32 %v490, %v563
    %v565 = vpop.f32.mrb[0].mxu0
    %v566 = vadd.f32 %v494, %v565
    %567 = vdwg.mxu0
    %s568 = scalar_lea.vmem [#allocation3], 2
    %v569 = vld [vmem:[%s568] sm:$0x3]
    %s570 = scalar_lea.vmem %s2, 2
    %v571 = vld [vmem:[%s570] sm:$0x3]
    %v572 = vmul.f32 %v108, %v569
    %v573 = vadd.f32 %v571, %v572
    %v574 = vmax.f32 %v573, 0.0
    %v576 = vlaneseq
    %v577 = vshrl.u32 %v576, 7
    %v578 = vsub.s32 0, %v577
    %v579 = vrot.slane %v574, %v578
    %v580 = vlaneseq
    %v581 = vshrl.u32 %v580, 7
    %v582 = vsub.s32 1, %v581
    %v583 = vrot.slane %v574, %v582
    %s586 = scalar_lea.vmem [#allocation6], 512
    %v587 = vld [vmem:[%s586] sm:$0xff]
    %v588 = vld [vmem:[%s586 + $0x8] sm:$0xff]
    %v589 = vld [vmem:[%s586 + $0x10] sm:$0xff]
    %v590 = vld [vmem:[%s586 + $0x18] sm:$0xff]
    %v591 = vld [vmem:[%s586 + $0x20] sm:$0xff]
    %v592 = vld [vmem:[%s586 + $0x28] sm:$0xff]
    %v593 = vld [vmem:[%s586 + $0x30] sm:$0xff]
    %v594 = vld [vmem:[%s586 + $0x38] sm:$0xff]
    %v595 = vld [vmem:[%s586 + $0x40] sm:$0xff]
    %v596 = vld [vmem:[%s586 + $0x48] sm:$0xff]
    %v597 = vld [vmem:[%s586 + $0x50] sm:$0xff]
    %v598 = vld [vmem:[%s586 + $0x58] sm:$0xff]
    %v599 = vld [vmem:[%s586 + $0x60] sm:$0xff]
    %v600 = vld [vmem:[%s586 + $0x68] sm:$0xff]
    %v601 = vld [vmem:[%s586 + $0x70] sm:$0xff]
    %v602 = vld [vmem:[%s586 + $0x78] sm:$0xff]
    %v603 = vld [vmem:[%s586 + $0x80] sm:$0xff]
    %v604 = vld [vmem:[%s586 + $0x88] sm:$0xff]
    %v605 = vld [vmem:[%s586 + $0x90] sm:$0xff]
    %v606 = vld [vmem:[%s586 + $0x98] sm:$0xff]
    %v607 = vld [vmem:[%s586 + $0xa0] sm:$0xff]
    %v608 = vld [vmem:[%s586 + $0xa8] sm:$0xff]
    %v609 = vld [vmem:[%s586 + $0xb0] sm:$0xff]
    %v610 = vld [vmem:[%s586 + $0xb8] sm:$0xff]
    %v611 = vld [vmem:[%s586 + $0xc0] sm:$0xff]
    %v612 = vld [vmem:[%s586 + $0xc8] sm:$0xff]
    %v613 = vld [vmem:[%s586 + $0xd0] sm:$0xff]
    %v614 = vld [vmem:[%s586 + $0xd8] sm:$0xff]
    %v615 = vld [vmem:[%s586 + $0xe0] sm:$0xff]
    %v616 = vld [vmem:[%s586 + $0xe8] sm:$0xff]
    %v617 = vld [vmem:[%s586 + $0xf0] sm:$0xff]
    %v618 = vld [vmem:[%s586 + $0xf8] sm:$0xff]
    %v619 = vld [vmem:[%s586 + $0x100] sm:$0xff]
    %v620 = vld [vmem:[%s586 + $0x108] sm:$0xff]
    %v621 = vld [vmem:[%s586 + $0x110] sm:$0xff]
    %v622 = vld [vmem:[%s586 + $0x118] sm:$0xff]
    %v623 = vld [vmem:[%s586 + $0x120] sm:$0xff]
    %v624 = vld [vmem:[%s586 + $0x128] sm:$0xff]
    %v625 = vld [vmem:[%s586 + $0x130] sm:$0xff]
    %v626 = vld [vmem:[%s586 + $0x138] sm:$0xff]
    %v627 = vld [vmem:[%s586 + $0x140] sm:$0xff]
    %v628 = vld [vmem:[%s586 + $0x148] sm:$0xff]
    %v629 = vld [vmem:[%s586 + $0x150] sm:$0xff]
    %v630 = vld [vmem:[%s586 + $0x158] sm:$0xff]
    %v631 = vld [vmem:[%s586 + $0x160] sm:$0xff]
    %v632 = vld [vmem:[%s586 + $0x168] sm:$0xff]
    %v633 = vld [vmem:[%s586 + $0x170] sm:$0xff]
    %v634 = vld [vmem:[%s586 + $0x178] sm:$0xff]
    %v635 = vld [vmem:[%s586 + $0x180] sm:$0xff]
    %v636 = vld [vmem:[%s586 + $0x188] sm:$0xff]
    %v637 = vld [vmem:[%s586 + $0x190] sm:$0xff]
    %v638 = vld [vmem:[%s586 + $0x198] sm:$0xff]
    %v639 = vld [vmem:[%s586 + $0x1a0] sm:$0xff]
    %v640 = vld [vmem:[%s586 + $0x1a8] sm:$0xff]
    %v641 = vld [vmem:[%s586 + $0x1b0] sm:$0xff]
    %v642 = vld [vmem:[%s586 + $0x1b8] sm:$0xff]
    %v643 = vld [vmem:[%s586 + $0x1c0] sm:$0xff]
    %v644 = vld [vmem:[%s586 + $0x1c8] sm:$0xff]
    %v645 = vld [vmem:[%s586 + $0x1d0] sm:$0xff]
    %v646 = vld [vmem:[%s586 + $0x1d8] sm:$0xff]
    %v647 = vld [vmem:[%s586 + $0x1e0] sm:$0xff]
    %v648 = vld [vmem:[%s586 + $0x1e8] sm:$0xff]
    %v649 = vld [vmem:[%s586 + $0x1f0] sm:$0xff]
    %v650 = vld [vmem:[%s586 + $0x1f8] sm:$0xff]
    %s651 = scalar_lea.vmem %s4, 2
    %v652 = vld [vmem:[%s651] sm:$0x3]
    %v654 = vlaneseq
    %v655 = vshrl.u32 %v654, 7
    %v656 = vsub.s32 0, %v655
    %v657 = vrot.slane %v652, %v656
    %v658 = vlaneseq
    %v659 = vshrl.u32 %v658, 7
    %v660 = vsub.s32 1, %v659
    %v661 = vrot.slane %v652, %v660
    %664 = vmatprep.subr.mxu0 %v588
    %665 = vmatpush1.msra.mxu0 %v587
    %666 = vmatprep.subr.mxu0 %v590
    %667 = vmatpush1.msra.mxu0 %v589
    %668 = vmatprep.subr.mxu0 %v592
    %669 = vmatpush1.msra.mxu0 %v591
    %670 = vmatprep.subr.mxu0 %v594
    %671 = vmatpush1.msra.mxu0 %v593
    %672 = vmatprep.subr.mxu0 %v596
    %673 = vmatpush1.msra.mxu0 %v595
    %674 = vmatprep.subr.mxu0 %v598
    %675 = vmatpush1.msra.mxu0 %v597
    %676 = vmatprep.subr.mxu0 %v600
    %677 = vmatpush1.msra.mxu0 %v599
    %678 = vmatprep.subr.mxu0 %v602
    %679 = vmatpush1.msra.mxu0 %v601
    %680 = vmatprep.subr.mxu0 %v604
    %681 = vmatpush1.msra.mxu0 %v603
    %682 = vmatprep.subr.mxu0 %v606
    %683 = vmatpush1.msra.mxu0 %v605
    %684 = vmatprep.subr.mxu0 %v608
    %685 = vmatpush1.msra.mxu0 %v607
    %686 = vmatprep.subr.mxu0 %v610
    %687 = vmatpush1.msra.mxu0 %v609
    %688 = vmatprep.subr.mxu0 %v612
    %689 = vmatpush1.msra.mxu0 %v611
    %690 = vmatprep.subr.mxu0 %v614
    %691 = vmatpush1.msra.mxu0 %v613
    %692 = vmatprep.subr.mxu0 %v616
    %693 = vmatpush1.msra.mxu0 %v615
    %694 = vmatprep.subr.mxu0 %v618
    %695 = vmatpush1.msra.mxu0 %v617
    %696 = vmatprep.subr.mxu0 %v620
    %697 = vmatpush1.msra.mxu0 %v619
    %698 = vmatprep.subr.mxu0 %v622
    %699 = vmatpush1.msra.mxu0 %v621
    %700 = vmatprep.subr.mxu0 %v624
    %701 = vmatpush1.msra.mxu0 %v623
    %702 = vmatprep.subr.mxu0 %v626
    %703 = vmatpush1.msra.mxu0 %v625
    %704 = vmatprep.subr.mxu0 %v628
    %705 = vmatpush1.msra.mxu0 %v627
    %706 = vmatprep.subr.mxu0 %v630
    %707 = vmatpush1.msra.mxu0 %v629
    %708 = vmatprep.subr.mxu0 %v632
    %709 = vmatpush1.msra.mxu0 %v631
    %710 = vmatprep.subr.mxu0 %v634
    %711 = vmatpush1.msra.mxu0 %v633
    %712 = vmatprep.subr.mxu0 %v636
    %713 = vmatpush1.msra.mxu0 %v635
    %714 = vmatprep.subr.mxu0 %v638
    %715 = vmatpush1.msra.mxu0 %v637
    %716 = vmatprep.subr.mxu0 %v640
    %717 = vmatpush1.msra.mxu0 %v639
    %718 = vmatprep.subr.mxu0 %v642
    %719 = vmatpush1.msra.mxu0 %v641
    %720 = vmatprep.subr.mxu0 %v644
    %721 = vmatpush1.msra.mxu0 %v643
    %722 = vmatprep.subr.mxu0 %v646
    %723 = vmatpush1.msra.mxu0 %v645
    %724 = vmatprep.subr.mxu0 %v648
    %725 = vmatpush1.msra.mxu0 %v647
    %726 = vmatprep.subr.mxu0 %v650
    %727 = vmatpush1.msra.mxu0 %v649
    %728 = vmatprep.mubr.f32.mxu0 %v583
    %729 = vmatmul.mubr.f32.gmra.mrb[0].mxu0 %v579
    %v730 = vpop.f32.mrb[0].mxu0
    %v731 = vadd.f32 %v657, %v730
    %v732 = vpop.f32.mrb[0].mxu0
    %v733 = vadd.f32 %v661, %v732
    %734 = vdwg.mxu0
    %v735 = vmax.f32 %v731, 0.0
    %v736 = vmax.f32 %v733, 0.0
    %s737 = scalar_lea.vmem [#allocation8], 512
    %v738 = vld [vmem:[%s737] sm:$0xff]
    %v739 = vld [vmem:[%s737 + $0x8] sm:$0xff]
    %v740 = vld [vmem:[%s737 + $0x10] sm:$0xff]
    %v741 = vld [vmem:[%s737 + $0x18] sm:$0xff]
    %v742 = vld [vmem:[%s737 + $0x20] sm:$0xff]
    %v743 = vld [vmem:[%s737 + $0x28] sm:$0xff]
    %v744 = vld [vmem:[%s737 + $0x30] sm:$0xff]
    %v745 = vld [vmem:[%s737 + $0x38] sm:$0xff]
    %v746 = vld [vmem:[%s737 + $0x40] sm:$0xff]
    %v747 = vld [vmem:[%s737 + $0x48] sm:$0xff]
    %v748 = vld [vmem:[%s737 + $0x50] sm:$0xff]
    %v749 = vld [vmem:[%s737 + $0x58] sm:$0xff]
    %v750 = vld [vmem:[%s737 + $0x60] sm:$0xff]
    %v751 = vld [vmem:[%s737 + $0x68] sm:$0xff]
    %v752 = vld [vmem:[%s737 + $0x70] sm:$0xff]
    %v753 = vld [vmem:[%s737 + $0x78] sm:$0xff]
    %v754 = vld [vmem:[%s737 + $0x80] sm:$0xff]
    %v755 = vld [vmem:[%s737 + $0x88] sm:$0xff]
    %v756 = vld [vmem:[%s737 + $0x90] sm:$0xff]
    %v757 = vld [vmem:[%s737 + $0x98] sm:$0xff]
    %v758 = vld [vmem:[%s737 + $0xa0] sm:$0xff]
    %v759 = vld [vmem:[%s737 + $0xa8] sm:$0xff]
    %v760 = vld [vmem:[%s737 + $0xb0] sm:$0xff]
    %v761 = vld [vmem:[%s737 + $0xb8] sm:$0xff]
    %v762 = vld [vmem:[%s737 + $0xc0] sm:$0xff]
    %v763 = vld [vmem:[%s737 + $0xc8] sm:$0xff]
    %v764 = vld [vmem:[%s737 + $0xd0] sm:$0xff]
    %v765 = vld [vmem:[%s737 + $0xd8] sm:$0xff]
    %v766 = vld [vmem:[%s737 + $0xe0] sm:$0xff]
    %v767 = vld [vmem:[%s737 + $0xe8] sm:$0xff]
    %v768 = vld [vmem:[%s737 + $0xf0] sm:$0xff]
    %v769 = vld [vmem:[%s737 + $0xf8] sm:$0xff]
    %v770 = vld [vmem:[%s737 + $0x100] sm:$0xff]
    %v771 = vld [vmem:[%s737 + $0x108] sm:$0xff]
    %v772 = vld [vmem:[%s737 + $0x110] sm:$0xff]
    %v773 = vld [vmem:[%s737 + $0x118] sm:$0xff]
    %v774 = vld [vmem:[%s737 + $0x120] sm:$0xff]
    %v775 = vld [vmem:[%s737 + $0x128] sm:$0xff]
    %v776 = vld [vmem:[%s737 + $0x130] sm:$0xff]
    %v777 = vld [vmem:[%s737 + $0x138] sm:$0xff]
    %v778 = vld [vmem:[%s737 + $0x140] sm:$0xff]
    %v779 = vld [vmem:[%s737 + $0x148] sm:$0xff]
    %v780 = vld [vmem:[%s737 + $0x150] sm:$0xff]
    %v781 = vld [vmem:[%s737 + $0x158] sm:$0xff]
    %v782 = vld [vmem:[%s737 + $0x160] sm:$0xff]
    %v783 = vld [vmem:[%s737 + $0x168] sm:$0xff]
    %v784 = vld [vmem:[%s737 + $0x170] sm:$0xff]
    %v785 = vld [vmem:[%s737 + $0x178] sm:$0xff]
    %v786 = vld [vmem:[%s737 + $0x180] sm:$0xff]
    %v787 = vld [vmem:[%s737 + $0x188] sm:$0xff]
    %v788 = vld [vmem:[%s737 + $0x190] sm:$0xff]
    %v789 = vld [vmem:[%s737 + $0x198] sm:$0xff]
    %v790 = vld [vmem:[%s737 + $0x1a0] sm:$0xff]
    %v791 = vld [vmem:[%s737 + $0x1a8] sm:$0xff]
    %v792 = vld [vmem:[%s737 + $0x1b0] sm:$0xff]
    %v793 = vld [vmem:[%s737 + $0x1b8] sm:$0xff]
    %v794 = vld [vmem:[%s737 + $0x1c0] sm:$0xff]
    %v795 = vld [vmem:[%s737 + $0x1c8] sm:$0xff]
    %v796 = vld [vmem:[%s737 + $0x1d0] sm:$0xff]
    %v797 = vld [vmem:[%s737 + $0x1d8] sm:$0xff]
    %v798 = vld [vmem:[%s737 + $0x1e0] sm:$0xff]
    %v799 = vld [vmem:[%s737 + $0x1e8] sm:$0xff]
    %v800 = vld [vmem:[%s737 + $0x1f0] sm:$0xff]
    %v801 = vld [vmem:[%s737 + $0x1f8] sm:$0xff]
    %s802 = scalar_lea.vmem %s6, 2
    %v803 = vld [vmem:[%s802] sm:$0x3]
    %v805 = vlaneseq
    %v806 = vshrl.u32 %v805, 7
    %v807 = vsub.s32 0, %v806
    %v808 = vrot.slane %v803, %v807
    %v809 = vlaneseq
    %v810 = vshrl.u32 %v809, 7
    %v811 = vsub.s32 1, %v810
    %v812 = vrot.slane %v803, %v811
    %815 = vmatprep.subr.mxu0 %v739
    %816 = vmatpush1.msra.mxu0 %v738
    %817 = vmatprep.subr.mxu0 %v741
    %818 = vmatpush1.msra.mxu0 %v740
    %819 = vmatprep.subr.mxu0 %v743
    %820 = vmatpush1.msra.mxu0 %v742
    %821 = vmatprep.subr.mxu0 %v745
    %822 = vmatpush1.msra.mxu0 %v744
    %823 = vmatprep.subr.mxu0 %v747
    %824 = vmatpush1.msra.mxu0 %v746
    %825 = vmatprep.subr.mxu0 %v749
    %826 = vmatpush1.msra.mxu0 %v748
    %827 = vmatprep.subr.mxu0 %v751
    %828 = vmatpush1.msra.mxu0 %v750
    %829 = vmatprep.subr.mxu0 %v753
    %830 = vmatpush1.msra.mxu0 %v752
    %831 = vmatprep.subr.mxu0 %v755
    %832 = vmatpush1.msra.mxu0 %v754
    %833 = vmatprep.subr.mxu0 %v757
    %834 = vmatpush1.msra.mxu0 %v756
    %835 = vmatprep.subr.mxu0 %v759
    %836 = vmatpush1.msra.mxu0 %v758
    %837 = vmatprep.subr.mxu0 %v761
    %838 = vmatpush1.msra.mxu0 %v760
    %839 = vmatprep.subr.mxu0 %v763
    %840 = vmatpush1.msra.mxu0 %v762
    %841 = vmatprep.subr.mxu0 %v765
    %842 = vmatpush1.msra.mxu0 %v764
    %843 = vmatprep.subr.mxu0 %v767
    %844 = vmatpush1.msra.mxu0 %v766
    %845 = vmatprep.subr.mxu0 %v769
    %846 = vmatpush1.msra.mxu0 %v768
    %847 = vmatprep.subr.mxu0 %v771
    %848 = vmatpush1.msra.mxu0 %v770
    %849 = vmatprep.subr.mxu0 %v773
    %850 = vmatpush1.msra.mxu0 %v772
    %851 = vmatprep.subr.mxu0 %v775
    %852 = vmatpush1.msra.mxu0 %v774
    %853 = vmatprep.subr.mxu0 %v777
    %854 = vmatpush1.msra.mxu0 %v776
    %855 = vmatprep.subr.mxu0 %v779
    %856 = vmatpush1.msra.mxu0 %v778
    %857 = vmatprep.subr.mxu0 %v781
    %858 = vmatpush1.msra.mxu0 %v780
    %859 = vmatprep.subr.mxu0 %v783
    %860 = vmatpush1.msra.mxu0 %v782
    %861 = vmatprep.subr.mxu0 %v785
    %862 = vmatpush1.msra.mxu0 %v784
    %863 = vmatprep.subr.mxu0 %v787
    %864 = vmatpush1.msra.mxu0 %v786
    %865 = vmatprep.subr.mxu0 %v789
    %866 = vmatpush1.msra.mxu0 %v788
    %867 = vmatprep.subr.mxu0 %v791
    %868 = vmatpush1.msra.mxu0 %v790
    %869 = vmatprep.subr.mxu0 %v793
    %870 = vmatpush1.msra.mxu0 %v792
    %871 = vmatprep.subr.mxu0 %v795
    %872 = vmatpush1.msra.mxu0 %v794
    %873 = vmatprep.subr.mxu0 %v797
    %874 = vmatpush1.msra.mxu0 %v796
    %875 = vmatprep.subr.mxu0 %v799
    %876 = vmatpush1.msra.mxu0 %v798
    %877 = vmatprep.subr.mxu0 %v801
    %878 = vmatpush1.msra.mxu0 %v800
    %879 = vmatprep.mubr.f32.mxu0 %v736
    %880 = vmatmul.mubr.f32.gmra.mrb[0].mxu0 %v735
    %v881 = vpop.f32.mrb[0].mxu0
    %v882 = vadd.f32 %v808, %v881
    %v883 = vpop.f32.mrb[0].mxu0
    %v884 = vadd.f32 %v812, %v883
    %885 = vdwg.mxu0
    %v886 = vmax.f32 %v882, 0.0
    %v887 = vmax.f32 %v884, 0.0
    %s888 = scalar_lea.vmem [#allocation9], 512
    %v889 = vld [vmem:[%s888] sm:$0xff]
    %v890 = vld [vmem:[%s888 + $0x8] sm:$0xff]
    %v891 = vld [vmem:[%s888 + $0x10] sm:$0xff]
    %v892 = vld [vmem:[%s888 + $0x18] sm:$0xff]
    %v893 = vld [vmem:[%s888 + $0x20] sm:$0xff]
    %v894 = vld [vmem:[%s888 + $0x28] sm:$0xff]
    %v895 = vld [vmem:[%s888 + $0x30] sm:$0xff]
    %v896 = vld [vmem:[%s888 + $0x38] sm:$0xff]
    %v897 = vld [vmem:[%s888 + $0x40] sm:$0xff]
    %v898 = vld [vmem:[%s888 + $0x48] sm:$0xff]
    %v899 = vld [vmem:[%s888 + $0x50] sm:$0xff]
    %v900 = vld [vmem:[%s888 + $0x58] sm:$0xff]
    %v901 = vld [vmem:[%s888 + $0x60] sm:$0xff]
    %v902 = vld [vmem:[%s888 + $0x68] sm:$0xff]
    %v903 = vld [vmem:[%s888 + $0x70] sm:$0xff]
    %v904 = vld [vmem:[%s888 + $0x78] sm:$0xff]
    %v905 = vld [vmem:[%s888 + $0x80] sm:$0xff]
    %v906 = vld [vmem:[%s888 + $0x88] sm:$0xff]
    %v907 = vld [vmem:[%s888 + $0x90] sm:$0xff]
    %v908 = vld [vmem:[%s888 + $0x98] sm:$0xff]
    %v909 = vld [vmem:[%s888 + $0xa0] sm:$0xff]
    %v910 = vld [vmem:[%s888 + $0xa8] sm:$0xff]
    %v911 = vld [vmem:[%s888 + $0xb0] sm:$0xff]
    %v912 = vld [vmem:[%s888 + $0xb8] sm:$0xff]
    %v913 = vld [vmem:[%s888 + $0xc0] sm:$0xff]
    %v914 = vld [vmem:[%s888 + $0xc8] sm:$0xff]
    %v915 = vld [vmem:[%s888 + $0xd0] sm:$0xff]
    %v916 = vld [vmem:[%s888 + $0xd8] sm:$0xff]
    %v917 = vld [vmem:[%s888 + $0xe0] sm:$0xff]
    %v918 = vld [vmem:[%s888 + $0xe8] sm:$0xff]
    %v919 = vld [vmem:[%s888 + $0xf0] sm:$0xff]
    %v920 = vld [vmem:[%s888 + $0xf8] sm:$0xff]
    %v921 = vld [vmem:[%s888 + $0x100] sm:$0xff]
    %v922 = vld [vmem:[%s888 + $0x108] sm:$0xff]
    %v923 = vld [vmem:[%s888 + $0x110] sm:$0xff]
    %v924 = vld [vmem:[%s888 + $0x118] sm:$0xff]
    %v925 = vld [vmem:[%s888 + $0x120] sm:$0xff]
    %v926 = vld [vmem:[%s888 + $0x128] sm:$0xff]
    %v927 = vld [vmem:[%s888 + $0x130] sm:$0xff]
    %v928 = vld [vmem:[%s888 + $0x138] sm:$0xff]
    %v929 = vld [vmem:[%s888 + $0x140] sm:$0xff]
    %v930 = vld [vmem:[%s888 + $0x148] sm:$0xff]
    %v931 = vld [vmem:[%s888 + $0x150] sm:$0xff]
    %v932 = vld [vmem:[%s888 + $0x158] sm:$0xff]
    %v933 = vld [vmem:[%s888 + $0x160] sm:$0xff]
    %v934 = vld [vmem:[%s888 + $0x168] sm:$0xff]
    %v935 = vld [vmem:[%s888 + $0x170] sm:$0xff]
    %v936 = vld [vmem:[%s888 + $0x178] sm:$0xff]
    %v937 = vld [vmem:[%s888 + $0x180] sm:$0xff]
    %v938 = vld [vmem:[%s888 + $0x188] sm:$0xff]
    %v939 = vld [vmem:[%s888 + $0x190] sm:$0xff]
    %v940 = vld [vmem:[%s888 + $0x198] sm:$0xff]
    %v941 = vld [vmem:[%s888 + $0x1a0] sm:$0xff]
    %v942 = vld [vmem:[%s888 + $0x1a8] sm:$0xff]
    %v943 = vld [vmem:[%s888 + $0x1b0] sm:$0xff]
    %v944 = vld [vmem:[%s888 + $0x1b8] sm:$0xff]
    %v945 = vld [vmem:[%s888 + $0x1c0] sm:$0xff]
    %v946 = vld [vmem:[%s888 + $0x1c8] sm:$0xff]
    %v947 = vld [vmem:[%s888 + $0x1d0] sm:$0xff]
    %v948 = vld [vmem:[%s888 + $0x1d8] sm:$0xff]
    %v949 = vld [vmem:[%s888 + $0x1e0] sm:$0xff]
    %v950 = vld [vmem:[%s888 + $0x1e8] sm:$0xff]
    %v951 = vld [vmem:[%s888 + $0x1f0] sm:$0xff]
    %v952 = vld [vmem:[%s888 + $0x1f8] sm:$0xff]
    %s953 = scalar_lea.vmem [#allocation11], 2
    %v954 = vld [vmem:[%s953] sm:$0x3]
    %v956 = vlaneseq
    %v957 = vshrl.u32 %v956, 7
    %v958 = vsub.s32 0, %v957
    %v959 = vrot.slane %v954, %v958
    %v960 = vlaneseq
    %v961 = vshrl.u32 %v960, 7
    %v962 = vsub.s32 1, %v961
    %v963 = vrot.slane %v954, %v962
    %966 = vmatprep.subr.mxu0 %v890
    %967 = vmatpush1.msra.mxu0 %v889
    %968 = vmatprep.subr.mxu0 %v892
    %969 = vmatpush1.msra.mxu0 %v891
    %970 = vmatprep.subr.mxu0 %v894
    %971 = vmatpush1.msra.mxu0 %v893
    %972 = vmatprep.subr.mxu0 %v896
    %973 = vmatpush1.msra.mxu0 %v895
    %974 = vmatprep.subr.mxu0 %v898
    %975 = vmatpush1.msra.mxu0 %v897
    %976 = vmatprep.subr.mxu0 %v900
    %977 = vmatpush1.msra.mxu0 %v899
    %978 = vmatprep.subr.mxu0 %v902
    %979 = vmatpush1.msra.mxu0 %v901
    %980 = vmatprep.subr.mxu0 %v904
    %981 = vmatpush1.msra.mxu0 %v903
    %982 = vmatprep.subr.mxu0 %v906
    %983 = vmatpush1.msra.mxu0 %v905
    %984 = vmatprep.subr.mxu0 %v908
    %985 = vmatpush1.msra.mxu0 %v907
    %986 = vmatprep.subr.mxu0 %v910
    %987 = vmatpush1.msra.mxu0 %v909
    %988 = vmatprep.subr.mxu0 %v912
    %989 = vmatpush1.msra.mxu0 %v911
    %990 = vmatprep.subr.mxu0 %v914
    %991 = vmatpush1.msra.mxu0 %v913
    %992 = vmatprep.subr.mxu0 %v916
    %993 = vmatpush1.msra.mxu0 %v915
    %994 = vmatprep.subr.mxu0 %v918
    %995 = vmatpush1.msra.mxu0 %v917
    %996 = vmatprep.subr.mxu0 %v920
    %997 = vmatpush1.msra.mxu0 %v919
    %998 = vmatprep.subr.mxu0 %v922
    %999 = vmatpush1.msra.mxu0 %v921
    %1000 = vmatprep.subr.mxu0 %v924
    %1001 = vmatpush1.msra.mxu0 %v923
    %1002 = vmatprep.subr.mxu0 %v926
    %1003 = vmatpush1.msra.mxu0 %v925
    %1004 = vmatprep.subr.mxu0 %v928
    %1005 = vmatpush1.msra.mxu0 %v927
    %1006 = vmatprep.subr.mxu0 %v930
    %1007 = vmatpush1.msra.mxu0 %v929
    %1008 = vmatprep.subr.mxu0 %v932
    %1009 = vmatpush1.msra.mxu0 %v931
    %1010 = vmatprep.subr.mxu0 %v934
    %1011 = vmatpush1.msra.mxu0 %v933
    %1012 = vmatprep.subr.mxu0 %v936
    %1013 = vmatpush1.msra.mxu0 %v935
    %1014 = vmatprep.subr.mxu0 %v938
    %1015 = vmatpush1.msra.mxu0 %v937
    %1016 = vmatprep.subr.mxu0 %v940
    %1017 = vmatpush1.msra.mxu0 %v939
    %1018 = vmatprep.subr.mxu0 %v942
    %1019 = vmatpush1.msra.mxu0 %v941
    %1020 = vmatprep.subr.mxu0 %v944
    %1021 = vmatpush1.msra.mxu0 %v943
    %1022 = vmatprep.subr.mxu0 %v946
    %1023 = vmatpush1.msra.mxu0 %v945
    %1024 = vmatprep.subr.mxu0 %v948
    %1025 = vmatpush1.msra.mxu0 %v947
    %1026 = vmatprep.subr.mxu0 %v950
    %1027 = vmatpush1.msra.mxu0 %v949
    %1028 = vmatprep.subr.mxu0 %v952
    %1029 = vmatpush1.msra.mxu0 %v951
    %1030 = vmatprep.mubr.f32.mxu0 %v887
    %1031 = vmatmul.mubr.f32.gmra.mrb[0].mxu0 %v886
    %v1032 = vpop.f32.mrb[0].mxu0
    %v1033 = vadd.f32 %v959, %v1032
    %v1034 = vpop.f32.mrb[0].mxu0
    %v1035 = vadd.f32 %v963, %v1034
    %1036 = vdwg.mxu0
    %v1037 = vld [vmem:[%s9] sm:$0xff]
    %v1038 = vld [vmem:[%s9 + $0x8] sm:$0xff]
    %v1039 = vlaneseq
    %v1040 = vshrl.u32 %v1039, 7
    %v1041 = vsub.s32 0, %v1040
    %v1042 = vrot.slane %v564, %v1041
    %v1043 = vlaneseq
    %v1044 = vshrl.u32 %v1043, 7
    %v1045 = vsub.s32 0, %v1044
    %v1046 = vrot.slane %v566, %v1045
    %v1047 = vmul.f32 %v1037, %v1042
    %v1048 = vmul.f32 %v1038, %v1046
    %v1049 = vlaneseq
    %v1050 = vshrl.u32 %v1049, 7
    %v1051 = vsub.s32 0, %v1050
    %v1052 = vrot.slane %v1033, %v1051
    %v1053 = vlaneseq
    %v1054 = vshrl.u32 %v1053, 7
    %v1055 = vsub.s32 0, %v1054
    %v1056 = vrot.slane %v1035, %v1055
    %v1057 = vadd.f32 %v1047, %v1052
    %v1058 = vadd.f32 %v1048, %v1056
    %1059 = vst [vmem:[#allocation12] sm:$0xff] %v1057
    %1060 = vst [vmem:[#allocation12 + $0x8] sm:$0xff] %v1058
    // Predicated region
    $region62: #{tpu_custom_call.1} parent=1 // pred_check
      _
    $region63: #{tpu_custom_call.1} parent=1 // pred_check_branch
      %1062 = sbr.rel (0) target = $region65
    $region64: #{tpu_custom_call.1} parent=1 // pred_region
      %s1064 = ssub.s32 256, 256
      %1065 = vsyncadd [#allocation5], %s1064
      %s1067 = sshll.u32 [#allocation12], 4
      %s1068 = int_to_ptr.vmem [resolvable:$true] %s1067
      %1070 = dma.vmem_to_hbm [thread:$0]  %s1068, 256, %s10, [#allocation5]
    $region65: #{tpu_custom_call.1} parent=1 // pred_fallthru
      _
    // Predicated region
    $region66: #{tpu_custom_call.1} parent=1 // pred_check
      _
    $region67: #{tpu_custom_call.1} parent=1 // pred_check_branch
      %1072 = sbr.rel (0) target = $region69
    $region68: #{tpu_custom_call.1} parent=1 // pred_region
      %1073 = dma.done [#allocation5], 256
    $region69: #{tpu_custom_call.1} parent=1 // pred_fallthru
      _
    %1074 = vsyncpa [#allocation4], 1
    %1075 = vsyncpa [#allocation7], 1
    %1076 = vsyncpa [#allocation10], 1
    %1077 = vsyncpa [#allocation5], 1

</llo_original>
